<compile_context>
chip_gen: v7x
topology: tpu7x:2x2x1
jax: 0.10.0
libtpu: 0.0.40
codegen_flags: <defaults>
</compile_context>

<pallas_src>
import math
import functools

import jax
import jax.numpy as jnp
from jax.experimental import pallas as pl
from jax.experimental.pallas import tpu as pltpu

DEG89 = math.pi / 180.0 * 89.0
EPS_NORM = 1e-12
EPS_CLAMP = 1e-7


def _has_bf16_valu():
    """bf16 VALU exists on v6e/v7x; not on v5e and older generations."""
    try:
        kind = jax.devices()[0].device_kind.lower()
    except Exception:
        return False
    return ("tpu" in kind) and not any(t in kind for t in ("v2", "v3", "v4", "v5"))


def _acos(x):
    # acos via atan2 (x already clamped away from +-1).
    # TODO(synk): check MLIR whether arctan2/sqrt land on EUP; if they lower to
    # a long VALU polynomial, replace with a short minimax acos.
    return jnp.arctan2(jnp.sqrt(jnp.maximum(1.0 - x * x, 0.0)), x)


def _merl_shading_kernel(points_ref, normals_ref, tex_ref, table_ref,
                         const_ref, out_ref, *, n_theta_h, n_theta_d, n_basis,
                         bf16_vpu):
    pts = points_ref[0]          # (3, TP)   channel-major, pixels on lanes
    nrm = normals_ref[0]         # (3, TP)
    tex = tex_ref[0]             # (NB, TP)  f32
    table = table_ref[0]         # (3*Th, NB*Td) bf16; row = c*Th+y, col = b*Td+x
    cst = const_ref[0]           # (3, 3)    cols: light_loc, light_diffuse, cam

    loc = cst[:, 0:1]            # (3, 1)
    dif = cst[:, 1:2]            # (3, 1)
    cam = cst[:, 2:3]            # (3, 1)

    tp = pts.shape[-1]

    # PointLights: light dir = location - point; view dir = cam - point
    light_dirs = loc - pts       # (3, TP)
    view_dirs = cam - pts        # (3, TP)

    def dot3(a, b):              # lane-dense per-pixel dot product -> (1, TP)
        return jnp.sum(a * b, axis=0, keepdims=True)

    def normalize(v):
        # torch.nn.functional.normalize semantics: v / max(||v||, eps)
        inv = jax.lax.rsqrt(jnp.maximum(dot3(v, v), EPS_NORM * EPS_NORM))
        return v * inv

    n_ = normalize(nrm)
    l_ = normalize(light_dirs)
    v_ = normalize(view_dirs)

    # Rusinkiewicz angles, return_dim == 2 -> (theta_h, theta_d)
    h = normalize(l_ + v_)
    clamp = lambda x: jnp.clip(x, -1.0 + EPS_CLAMP, 1.0 - EPS_CLAMP)
    theta_h = _acos(clamp(dot3(h, n_)))           # (1, TP)
    theta_d = _acos(clamp(dot3(l_, v_))) * 0.5    # (1, TP)

    falloff = dot3(n_, l_)                        # (1, TP)
    visible = (falloff > 0.0) & (dot3(nrm, view_dirs) > 0.0)
    falloff = jnp.where(visible, falloff, 0.0)

    # Tent-formula bilinear weights == F.grid_sample(bilinear, padding='zeros',
    # align_corners=True); out-of-range thetas give all-zero weight columns,
    # idx in (-1,0) / (size-1,size) get the single in-range corner weight.
    def tent_w(theta, size, rows_f):
        idx = theta * ((size - 1) / DEG89)        # (1, TP)
        return jnp.maximum(1.0 - jnp.abs(rows_f - idx), 0.0)   # (size, TP)

    rows_h = jax.lax.broadcasted_iota(jnp.int32, (n_theta_h, tp), 0).astype(jnp.float32)
    if n_theta_d == n_theta_h:
        rows_d = rows_h                            # reuse one iota
    else:
        rows_d = jax.lax.broadcasted_iota(jnp.int32, (n_theta_d, tp), 0).astype(jnp.float32)

    wy = tent_w(theta_h, n_theta_h, rows_h)       # (Th, TP) f32
    wx = tent_w(theta_d, n_theta_d, rows_d)       # (Td, TP) f32

    # Fold texel basis weights into the theta_d weights with a single broadcast
    # multiply + reshape (no 8-way concat):  V[b*Td + x, p] = tex[b,p] * wx[x,p]
    mdt = jnp.bfloat16 if bf16_vpu else jnp.float32
    V = (tex.astype(mdt)[:, None, :] * wx.astype(mdt)[None, :, :])      # (NB,Td,TP)
    V = V.reshape(n_basis * n_theta_d, tp).astype(jnp.bfloat16)         # (NB*Td, TP)

    # One MXU matmul (bf16 operands, f32 accumulate) contracts basis & theta_d:
    #   M[c*Th + y, p] = sum_{b,x} table[c,y,b,x] * tex[b,p] * wx[x,p]
    M = jnp.dot(table, V, preferred_element_type=jnp.float32)   # (3*Th, TP) f32

    # theta_h contraction: reflectance[c, p] = sum_y M[c*Th + y, p] * wy[y, p]
    refl = []
    for c in range(3):
        mc = M[c * n_theta_h:(c + 1) * n_theta_h, :]             # (Th, TP)
        refl.append(jnp.sum(mc * wy, axis=0, keepdims=True))     # (1, TP)
    reflectance = jnp.concatenate(refl, axis=0)                  # (3, TP)

    # shading = reflectance * falloff * diffuse_color / |light_dirs|^2
    dist2 = jnp.maximum(dot3(light_dirs, light_dirs), EPS_NORM)
    inv_d2 = pl.reciprocal(dist2, approx=True)
    shading = reflectance * falloff * dif * inv_d2
    out_ref[0] = shading.astype(out_ref.dtype)


def merl_apply_lighting_pallas(points_cm, normals_cm, texels_cm, materials,
                               light_location, light_diffuse, camera_center,
                               tile_p=2048):
    """Channel-major inputs/outputs (no wrapper-side HBM transposes).

    points_cm/normals_cm: (N, 3, P); texels_cm: (N, NB, P);
    materials: (N, NB, 3, Th, Td); light_*: (N, 3); camera_center: (3,).
    Returns shading colors channel-major: (N, 3, P) float32.
    """
    N, _, P = points_cm.shape
    NB = texels_cm.shape[1]
    Th, Td = materials.shape[-2:]

    # Lane-major tiling: tile must be a multiple of 128; pad P up.  Big tiles
    # amortize the ~0.35 us per-grid-step overhead; keep >=2 p-tiles when N==1
    # so both v7x TensorCores get work from the "parallel" grid axes.
    tile_p = max(128, (int(tile_p) // 128) * 128)
    lanes = ((P + 127) // 128) * 128
    tp = min(tile_p, lanes)
    if N == 1 and lanes >= 256:
        tp = min(tp, max(128, ((lanes // 2) // 128) * 128))
    P_pad = ((P + tp - 1) // tp) * tp

    def pad_p(x):  # (N, C, P) -> (N, C, P_pad)
        x = x.astype(jnp.float32)
        if P_pad != P:
            x = jnp.pad(x, ((0, 0), (0, 0), (0, P_pad - P)))
        return x

    pts = pad_p(points_cm)                   # (N, 3, Pp)
    nrm = pad_p(normals_cm)                  # (N, 3, Pp)
    tex = pad_p(texels_cm)                   # (N, NB, Pp)

    # (N, NB, 3, Th, Td) -> (N, 3*Th, NB*Td) bf16: row = c*Th + y, col = b*Td + x
    table = jnp.transpose(materials.astype(jnp.float32),
                          (0, 2, 3, 1, 4)).reshape(N, 3 * Th, NB * Td)
    table = table.astype(jnp.bfloat16)

    cam = jnp.broadcast_to(
        jnp.asarray(camera_center, jnp.float32).reshape(1, 3), (N, 3))
    # TODO(synk): these 9 constants could live in SMEM (scalar prefetch) to
    # avoid the (3,1) lane-broadcasts; the cost is 3 broadcasts per tile so the
    # VMEM path is kept for robustness.
    consts = jnp.stack([light_location.astype(jnp.float32),
                        light_diffuse.astype(jnp.float32),
                        cam], axis=-1)        # (N, 3, 3): xyz rows, const cols

    kernel = functools.partial(_merl_shading_kernel,
                               n_theta_h=Th, n_theta_d=Td, n_basis=NB,
                               bf16_vpu=_has_bf16_valu())

    grid = (N, P_pad // tp)
    grid_steps = N * (P_pad // tp)
    cost = pl.CostEstimate(
        flops=int(grid_steps * (2 * (3 * Th) * (NB * Td) * tp + 400 * tp)),
        transcendentals=int(grid_steps * 8 * tp),
        bytes_accessed=int(N * P_pad * (3 + 3 + NB + 3) * 4
                           + N * (3 * Th) * (NB * Td) * 2),
    )

    out = pl.pallas_call(
        kernel,
        out_shape=jax.ShapeDtypeStruct((N, 3, P_pad), jnp.float32),
        grid_spec=pltpu.PrefetchScalarGridSpec(
            num_scalar_prefetch=0,
            grid=grid,
            in_specs=[
                pl.BlockSpec((1, 3, tp), lambda n, p: (n, 0, p)),       # coords
                pl.BlockSpec((1, 3, tp), lambda n, p: (n, 0, p)),       # normals
                pl.BlockSpec((1, NB, tp), lambda n, p: (n, 0, p)),      # texels
                pl.BlockSpec((1, 3 * Th, NB * Td), lambda n, p: (n, 0, 0)),  # table
                pl.BlockSpec((1, 3, 3), lambda n, p: (n, 0, 0)),        # constants
            ],
            out_specs=pl.BlockSpec((1, 3, tp), lambda n, p: (n, 0, p)),
        ),
        compiler_params=pltpu.CompilerParams(
            dimension_semantics=("parallel", "parallel"),
            vmem_limit_bytes=48 * 1024 * 1024),
        cost_estimate=cost,
    )(pts, nrm, tex, table, consts)

    return out[:, :, :P]                     # channel-major (N, 3, P)


# ----------------------------- JAX glue ------------------------------------
def interpolate_face_attributes_cm(pix_to_face, bary_coords, face_attrs):
    """Barycentric interpolation producing channel-major (N, D, P) directly.

    pix_to_face: (N,H,W,K) int32; bary_coords: (N,H,W,K,3); face_attrs: (F,3,D)
    """
    N, H, W, K = pix_to_face.shape
    P = H * W * K
    p2f = pix_to_face.reshape(N, P)
    bary = bary_coords.reshape(N, P, 3)
    mask = p2f < 0
    idx = jnp.where(mask, 0, p2f)
    gathered = face_attrs[idx]                                   # (N, P, 3, D)
    out = jnp.einsum('npv,npvd->ndp', bary, gathered)            # (N, D, P)
    return jnp.where(mask[:, None, :], 0.0, out)


def hard_rgb_blend_cm(colors_cm, pix_to_face, background_color=(1.0, 1.0, 1.0)):
    """colors_cm: (N, 3, H*W*K) channel-major -> (N, H, W, 4)."""
    N, H, W, K = pix_to_face.shape
    colors = colors_cm.reshape(N, 3, H, W, K)[..., 0]            # closest face
    colors = jnp.moveaxis(colors, 1, -1)                         # (N, H, W, 3)
    is_background = pix_to_face[..., 0] < 0                      # (N, H, W)
    bg = jnp.asarray(background_color, colors.dtype)
    rgb = jnp.where(is_background[..., None], bg, colors)
    alpha = jnp.ones(rgb.shape[:-1] + (1,), colors.dtype)
    return jnp.concatenate([rgb, alpha], axis=-1)                # (N, H, W, 4)


class HardMerlShaderPallas:
    """JAX/Pallas equivalent of HardMerlShader.forward (PointLights, brdf_nd=2).

    ambient_color == 0 (as in _apply_lighting), so colors == shading_color.
    """
    # TODO(synk): pytorch3d rasterization (fragments) and Meshes/Textures
    # classes are not reproduced; fragments + vertex attributes are taken as
    # plain arrays and sample_textures is modeled as TexturesVertex-style
    # barycentric interpolation of per-vertex basis weights.

    def __init__(self, camera_center, light_location, light_diffuse, materials,
                 background_color=(1.0, 1.0, 1.0)):
        self.camera_center = camera_center
        self.light_location = light_location
        self.light_diffuse = light_diffuse
        self.materials = materials
        self.background_color = background_color

    def __call__(self, pix_to_face, bary_coords, verts, faces,
                 vert_normals, vert_textures):
        faces_verts = verts[faces]                 # (F, 3, 3)
        faces_normals = vert_normals[faces]        # (F, 3, 3)
        faces_tex = vert_textures[faces]           # (F, 3, NB)

        # channel-major (N, C, P) straight out of the interpolation einsum
        pixel_coords = interpolate_face_attributes_cm(pix_to_face, bary_coords, faces_verts)
        pixel_normals = interpolate_face_attributes_cm(pix_to_face, bary_coords, faces_normals)
        texels = interpolate_face_attributes_cm(pix_to_face, bary_coords, faces_tex)

        colors_cm = merl_apply_lighting_pallas(
            pixel_coords, pixel_normals, texels,
            self.materials, self.light_location, self.light_diffuse,
            self.camera_center)
        return hard_rgb_blend_cm(colors_cm, pix_to_face, self.background_color)


if __name__ == "__main__":
    key = jax.random.PRNGKey(0)
    kV, kF, kN, kT, kP, kB, kM, kL = jax.random.split(key, 8)

    N, H, W, K = 2, 16, 16, 1          # image batch / size, K=closest face only
    V, F = 32, 20                      # synthetic mesh
    NB = 8                             # number of BRDF basis materials
    TH, TD = 16, 16                    # n_theta_h, n_theta_d of the MERL table

    verts = jax.random.normal(kV, (V, 3), jnp.float32)
    faces = jax.random.randint(kF, (F, 3), 0, V, jnp.int32)
    vert_normals = jax.random.normal(kN, (V, 3), jnp.float32)
    vert_normals = vert_normals / jnp.linalg.norm(vert_normals, axis=-1, keepdims=True)
    vert_textures = jax.random.uniform(kT, (V, NB), jnp.float32)

    # fragments: some background pixels (pix_to_face == -1)
    pix_to_face = jax.random.randint(kP, (N, H, W, K), -1, F, jnp.int32)
    bary = jax.random.uniform(kB, (N, H, W, K, 3), jnp.float32, 0.05, 1.0)
    bary = bary / jnp.sum(bary, axis=-1, keepdims=True)

    # MERL BRDF basis table (N, n_basis, 3, n_theta_h, n_theta_d)
    materials = jax.random.uniform(kM, (N, NB, 3, TH, TD), jnp.float32)

    light_location = jnp.array([[0.0, 1.0, 3.0], [1.0, 2.0, 3.0]], jnp.float32)
    light_diffuse = jnp.array([[0.3, 0.3, 0.3], [0.5, 0.4, 0.3]], jnp.float32)
    camera_center = jnp.array([0.0, 0.0, 5.0], jnp.float32)

    shader = HardMerlShaderPallas(camera_center, light_location, light_diffuse,
                                  materials)
    images = shader(pix_to_face, bary, verts, faces, vert_normals, vert_textures)
    images = jax.block_until_ready(images)
    assert images.shape == (N, H, W, 4)
    assert bool(jnp.all(jnp.isfinite(images)))
    print("KERNEL_OK")
</pallas_src>

<mosaic_0001>
module attributes {stable_mosaic.version = 11 : i64} {
  func.func @_merl_shading_kernel(%arg0: i32, %arg1: i32, %arg2: memref<1x3x256xf32, #tpu.memory_space<vmem>>, %arg3: memref<1x3x256xf32, #tpu.memory_space<vmem>>, %arg4: memref<1x8x256xf32, #tpu.memory_space<vmem>>, %arg5: memref<1x48x128xbf16, #tpu.memory_space<vmem>>, %arg6: memref<1x3x3xf32, #tpu.memory_space<vmem>>, %arg7: memref<1x3x256xf32, #tpu.memory_space<vmem>>) attributes {dimension_semantics = [#tpu.dimension_semantics<parallel>, #tpu.dimension_semantics<parallel>], iteration_bounds = array<i64: 2, 1>, scalar_prefetch = 0 : i64, scratch_operands = 0 : i64, tpu.core_type = #tpu.core_type<tc>, window_params = [{transform_indices = @transform_0, window_bounds = array<i64: 1, 3, 256>}, {transform_indices = @transform_1, window_bounds = array<i64: 1, 3, 256>}, {transform_indices = @transform_2, window_bounds = array<i64: 1, 8, 256>}, {transform_indices = @transform_3, window_bounds = array<i64: 1, 48, 128>}, {transform_indices = @transform_4, window_bounds = array<i64: 1, 3, 3>}, {transform_indices = @transform_5, window_bounds = array<i64: 1, 3, 256>}]} {
    %c0 = arith.constant 0 : index
    %c0_0 = arith.constant 0 : index
    %c0_1 = arith.constant 0 : index
    %0 = vector.load %arg2[%c0, %c0_0, %c0_1] : memref<1x3x256xf32, #tpu.memory_space<vmem>>, vector<1x3x256xf32>
    %1 = vector.shape_cast %0 : vector<1x3x256xf32> to vector<3x256xf32>
    %c0_2 = arith.constant 0 : index
    %c0_3 = arith.constant 0 : index
    %c0_4 = arith.constant 0 : index
    %2 = vector.load %arg3[%c0_2, %c0_3, %c0_4] : memref<1x3x256xf32, #tpu.memory_space<vmem>>, vector<1x3x256xf32>
    %3 = vector.shape_cast %2 : vector<1x3x256xf32> to vector<3x256xf32>
    %c0_5 = arith.constant 0 : index
    %c0_6 = arith.constant 0 : index
    %c0_7 = arith.constant 0 : index
    %4 = vector.load %arg4[%c0_5, %c0_6, %c0_7] : memref<1x8x256xf32, #tpu.memory_space<vmem>>, vector<1x8x256xf32>
    %5 = vector.shape_cast %4 : vector<1x8x256xf32> to vector<8x256xf32>
    %c0_8 = arith.constant 0 : index
    %c0_9 = arith.constant 0 : index
    %c0_10 = arith.constant 0 : index
    %6 = vector.load %arg5[%c0_8, %c0_9, %c0_10] : memref<1x48x128xbf16, #tpu.memory_space<vmem>>, vector<1x48x128xbf16>
    %7 = vector.shape_cast %6 : vector<1x48x128xbf16> to vector<48x128xbf16>
    %c0_11 = arith.constant 0 : index
    %c0_12 = arith.constant 0 : index
    %c0_13 = arith.constant 0 : index
    %8 = vector.load %arg6[%c0_11, %c0_12, %c0_13] : memref<1x3x3xf32, #tpu.memory_space<vmem>>, vector<1x3x3xf32>
    %9 = vector.shape_cast %8 : vector<1x3x3xf32> to vector<3x3xf32>
    %10 = vector.extract_strided_slice %9 {offsets = [0, 0], sizes = [3, 1], strides = [1, 1]} : vector<3x3xf32> to vector<3x1xf32>
    %11 = vector.extract_strided_slice %9 {offsets = [0, 1], sizes = [3, 1], strides = [1, 1]} : vector<3x3xf32> to vector<3x1xf32>
    %12 = vector.extract_strided_slice %9 {offsets = [0, 2], sizes = [3, 1], strides = [1, 1]} : vector<3x3xf32> to vector<3x1xf32>
    %13 = vector.broadcast %10 : vector<3x1xf32> to vector<3x256xf32>
    %14 = arith.subf %13, %1 : vector<3x256xf32>
    %15 = vector.broadcast %12 : vector<3x1xf32> to vector<3x256xf32>
    %16 = arith.subf %15, %1 : vector<3x256xf32>
    %17 = arith.mulf %3, %3 : vector<3x256xf32>
    %cst = arith.constant dense<0.000000e+00> : vector<256xf32>
    %18 = vector.multi_reduction <add>, %17, %cst [0] : vector<3x256xf32> to vector<256xf32>
    %19 = vector.shape_cast %18 : vector<256xf32> to vector<1x256xf32>
    %cst_14 = arith.constant 1.000000e-24 : f32
    %20 = vector.broadcast %cst_14 : f32 to vector<1x256xf32>
    %21 = arith.maximumf %19, %20 : vector<1x256xf32>
    %22 = math.rsqrt %21 : vector<1x256xf32>
    %23 = vector.broadcast %22 : vector<1x256xf32> to vector<3x256xf32>
    %24 = arith.mulf %3, %23 : vector<3x256xf32>
    %25 = arith.mulf %14, %14 : vector<3x256xf32>
    %cst_15 = arith.constant dense<0.000000e+00> : vector<256xf32>
    %26 = vector.multi_reduction <add>, %25, %cst_15 [0] : vector<3x256xf32> to vector<256xf32>
    %27 = vector.shape_cast %26 : vector<256xf32> to vector<1x256xf32>
    %cst_16 = arith.constant 1.000000e-24 : f32
    %28 = vector.broadcast %cst_16 : f32 to vector<1x256xf32>
    %29 = arith.maximumf %27, %28 : vector<1x256xf32>
    %30 = math.rsqrt %29 : vector<1x256xf32>
    %31 = vector.broadcast %30 : vector<1x256xf32> to vector<3x256xf32>
    %32 = arith.mulf %14, %31 : vector<3x256xf32>
    %33 = arith.mulf %16, %16 : vector<3x256xf32>
    %cst_17 = arith.constant dense<0.000000e+00> : vector<256xf32>
    %34 = vector.multi_reduction <add>, %33, %cst_17 [0] : vector<3x256xf32> to vector<256xf32>
    %35 = vector.shape_cast %34 : vector<256xf32> to vector<1x256xf32>
    %cst_18 = arith.constant 1.000000e-24 : f32
    %36 = vector.broadcast %cst_18 : f32 to vector<1x256xf32>
    %37 = arith.maximumf %35, %36 : vector<1x256xf32>
    %38 = math.rsqrt %37 : vector<1x256xf32>
    %39 = vector.broadcast %38 : vector<1x256xf32> to vector<3x256xf32>
    %40 = arith.mulf %16, %39 : vector<3x256xf32>
    %41 = arith.addf %32, %40 : vector<3x256xf32>
    %42 = arith.mulf %41, %41 : vector<3x256xf32>
    %cst_19 = arith.constant dense<0.000000e+00> : vector<256xf32>
    %43 = vector.multi_reduction <add>, %42, %cst_19 [0] : vector<3x256xf32> to vector<256xf32>
    %44 = vector.shape_cast %43 : vector<256xf32> to vector<1x256xf32>
    %cst_20 = arith.constant 1.000000e-24 : f32
    %45 = vector.broadcast %cst_20 : f32 to vector<1x256xf32>
    %46 = arith.maximumf %44, %45 : vector<1x256xf32>
    %47 = math.rsqrt %46 : vector<1x256xf32>
    %48 = vector.broadcast %47 : vector<1x256xf32> to vector<3x256xf32>
    %49 = arith.mulf %41, %48 : vector<3x256xf32>
    %50 = arith.mulf %49, %24 : vector<3x256xf32>
    %cst_21 = arith.constant dense<0.000000e+00> : vector<256xf32>
    %51 = vector.multi_reduction <add>, %50, %cst_21 [0] : vector<3x256xf32> to vector<256xf32>
    %52 = vector.shape_cast %51 : vector<256xf32> to vector<1x256xf32>
    %cst_22 = arith.constant -0.99999988 : f32
    %cst_23 = arith.constant 0.99999988 : f32
    %53 = vector.broadcast %cst_22 : f32 to vector<1x256xf32>
    %54 = arith.maximumf %53, %52 : vector<1x256xf32>
    %55 = vector.broadcast %cst_23 : f32 to vector<1x256xf32>
    %56 = arith.minimumf %55, %54 : vector<1x256xf32>
    %57 = arith.mulf %56, %56 : vector<1x256xf32>
    %cst_24 = arith.constant 1.000000e+00 : f32
    %58 = vector.broadcast %cst_24 : f32 to vector<1x256xf32>
    %59 = arith.subf %58, %57 : vector<1x256xf32>
    %cst_25 = arith.constant 0.000000e+00 : f32
    %60 = vector.broadcast %cst_25 : f32 to vector<1x256xf32>
    %61 = arith.maximumf %59, %60 : vector<1x256xf32>
    %62 = math.sqrt %61 : vector<1x256xf32>
    %63 = math.atan2 %62, %56 : vector<1x256xf32>
    %64 = arith.mulf %32, %40 : vector<3x256xf32>
    %cst_26 = arith.constant dense<0.000000e+00> : vector<256xf32>
    %65 = vector.multi_reduction <add>, %64, %cst_26 [0] : vector<3x256xf32> to vector<256xf32>
    %66 = vector.shape_cast %65 : vector<256xf32> to vector<1x256xf32>
    %cst_27 = arith.constant -0.99999988 : f32
    %cst_28 = arith.constant 0.99999988 : f32
    %67 = vector.broadcast %cst_27 : f32 to vector<1x256xf32>
    %68 = arith.maximumf %67, %66 : vector<1x256xf32>
    %69 = vector.broadcast %cst_28 : f32 to vector<1x256xf32>
    %70 = arith.minimumf %69, %68 : vector<1x256xf32>
    %71 = arith.mulf %70, %70 : vector<1x256xf32>
    %cst_29 = arith.constant 1.000000e+00 : f32
    %72 = vector.broadcast %cst_29 : f32 to vector<1x256xf32>
    %73 = arith.subf %72, %71 : vector<1x256xf32>
    %cst_30 = arith.constant 0.000000e+00 : f32
    %74 = vector.broadcast %cst_30 : f32 to vector<1x256xf32>
    %75 = arith.maximumf %73, %74 : vector<1x256xf32>
    %76 = math.sqrt %75 : vector<1x256xf32>
    %77 = math.atan2 %76, %70 : vector<1x256xf32>
    %cst_31 = arith.constant 5.000000e-01 : f32
    %78 = vector.broadcast %cst_31 : f32 to vector<1x256xf32>
    %79 = arith.mulf %77, %78 : vector<1x256xf32>
    %80 = arith.mulf %24, %32 : vector<3x256xf32>
    %cst_32 = arith.constant dense<0.000000e+00> : vector<256xf32>
    %81 = vector.multi_reduction <add>, %80, %cst_32 [0] : vector<3x256xf32> to vector<256xf32>
    %82 = vector.shape_cast %81 : vector<256xf32> to vector<1x256xf32>
    %cst_33 = arith.constant 0.000000e+00 : f32
    %83 = vector.broadcast %cst_33 : f32 to vector<1x256xf32>
    %84 = arith.cmpf ogt, %82, %83 : vector<1x256xf32>
    %85 = arith.mulf %3, %16 : vector<3x256xf32>
    %cst_34 = arith.constant dense<0.000000e+00> : vector<256xf32>
    %86 = vector.multi_reduction <add>, %85, %cst_34 [0] : vector<3x256xf32> to vector<256xf32>
    %87 = vector.shape_cast %86 : vector<256xf32> to vector<1x256xf32>
    %cst_35 = arith.constant 0.000000e+00 : f32
    %88 = vector.broadcast %cst_35 : f32 to vector<1x256xf32>
    %89 = arith.cmpf ogt, %87, %88 : vector<1x256xf32>
    %90 = arith.andi %84, %89 : vector<1x256xi1>
    %cst_36 = arith.constant 0.000000e+00 : f32
    %91 = vector.broadcast %cst_36 : f32 to vector<1x256xf32>
    %92 = arith.select %90, %82, %91 : vector<1x256xi1>, vector<1x256xf32>
    %93 = tpu.iota {dimensions = array<i32: 0>} : vector<16x256xi32>
    %94 = arith.sitofp %93 : vector<16x256xi32> to vector<16x256xf32>
    %cst_37 = arith.constant 9.65659236 : f32
    %95 = vector.broadcast %cst_37 : f32 to vector<1x256xf32>
    %96 = arith.mulf %63, %95 : vector<1x256xf32>
    %97 = vector.broadcast %96 : vector<1x256xf32> to vector<16x256xf32>
    %98 = arith.subf %94, %97 : vector<16x256xf32>
    %99 = math.absf %98 : vector<16x256xf32>
    %cst_38 = arith.constant 1.000000e+00 : f32
    %100 = vector.broadcast %cst_38 : f32 to vector<16x256xf32>
    %101 = arith.subf %100, %99 : vector<16x256xf32>
    %cst_39 = arith.constant 0.000000e+00 : f32
    %102 = vector.broadcast %cst_39 : f32 to vector<16x256xf32>
    %103 = arith.maximumf %101, %102 : vector<16x256xf32>
    %cst_40 = arith.constant 9.65659236 : f32
    %104 = vector.broadcast %cst_40 : f32 to vector<1x256xf32>
    %105 = arith.mulf %79, %104 : vector<1x256xf32>
    %106 = vector.broadcast %105 : vector<1x256xf32> to vector<16x256xf32>
    %107 = arith.subf %94, %106 : vector<16x256xf32>
    %108 = math.absf %107 : vector<16x256xf32>
    %cst_41 = arith.constant 1.000000e+00 : f32
    %109 = vector.broadcast %cst_41 : f32 to vector<16x256xf32>
    %110 = arith.subf %109, %108 : vector<16x256xf32>
    %cst_42 = arith.constant 0.000000e+00 : f32
    %111 = vector.broadcast %cst_42 : f32 to vector<16x256xf32>
    %112 = arith.maximumf %110, %111 : vector<16x256xf32>
    %113 = vector.shape_cast %5 : vector<8x256xf32> to vector<8x1x256xf32>
    %114 = vector.shape_cast %112 : vector<16x256xf32> to vector<1x16x256xf32>
    %115 = vector.broadcast %113 : vector<8x1x256xf32> to vector<8x16x256xf32>
    %116 = vector.broadcast %114 : vector<1x16x256xf32> to vector<8x16x256xf32>
    %117 = arith.mulf %115, %116 : vector<8x16x256xf32>
    %118 = vector.shape_cast %117 : vector<8x16x256xf32> to vector<128x256xf32>
    %119 = arith.truncf %118 : vector<128x256xf32> to vector<128x256xbf16>
    %cst_43 = arith.constant dense<0.000000e+00> : vector<48x256xf32>
    %120 = tpu.matmul %7, %119, %cst_43 {dimension_numbers = #tpu.dot_dimension_numbers<[1], [0], [0], [1], [0, 0, 1, 1], [], []>} : vector<48x128xbf16>, vector<128x256xbf16>, vector<48x256xf32> -> vector<48x256xf32>
    %121 = vector.extract_strided_slice %120 {offsets = [0, 0], sizes = [16, 256], strides = [1, 1]} : vector<48x256xf32> to vector<16x256xf32>
    %122 = arith.mulf %121, %103 : vector<16x256xf32>
    %cst_44 = arith.constant dense<0.000000e+00> : vector<256xf32>
    %123 = vector.multi_reduction <add>, %122, %cst_44 [0] : vector<16x256xf32> to vector<256xf32>
    %124 = vector.shape_cast %123 : vector<256xf32> to vector<1x256xf32>
    %125 = vector.extract_strided_slice %120 {offsets = [16, 0], sizes = [16, 256], strides = [1, 1]} : vector<48x256xf32> to vector<16x256xf32>
    %126 = arith.mulf %125, %103 : vector<16x256xf32>
    %cst_45 = arith.constant dense<0.000000e+00> : vector<256xf32>
    %127 = vector.multi_reduction <add>, %126, %cst_45 [0] : vector<16x256xf32> to vector<256xf32>
    %128 = vector.shape_cast %127 : vector<256xf32> to vector<1x256xf32>
    %129 = vector.extract_strided_slice %120 {offsets = [32, 0], sizes = [16, 256], strides = [1, 1]} : vector<48x256xf32> to vector<16x256xf32>
    %130 = arith.mulf %129, %103 : vector<16x256xf32>
    %cst_46 = arith.constant dense<0.000000e+00> : vector<256xf32>
    %131 = vector.multi_reduction <add>, %130, %cst_46 [0] : vector<16x256xf32> to vector<256xf32>
    %132 = vector.shape_cast %131 : vector<256xf32> to vector<1x256xf32>
    %133 = tpu.concatenate %124, %128, %132 in 0 : vector<1x256xf32>, vector<1x256xf32>, vector<1x256xf32> -> vector<3x256xf32>
    %134 = arith.mulf %14, %14 : vector<3x256xf32>
    %cst_47 = arith.constant dense<0.000000e+00> : vector<256xf32>
    %135 = vector.multi_reduction <add>, %134, %cst_47 [0] : vector<3x256xf32> to vector<256xf32>
    %136 = vector.shape_cast %135 : vector<256xf32> to vector<1x256xf32>
    %cst_48 = arith.constant 9.99999996E-13 : f32
    %137 = vector.broadcast %cst_48 : f32 to vector<1x256xf32>
    %138 = arith.maximumf %136, %137 : vector<1x256xf32>
    %139 = tpu.reciprocal %138 {approx = true} : vector<1x256xf32> -> vector<1x256xf32>
    %140 = vector.broadcast %92 : vector<1x256xf32> to vector<3x256xf32>
    %141 = arith.mulf %133, %140 : vector<3x256xf32>
    %142 = vector.broadcast %11 : vector<3x1xf32> to vector<3x256xf32>
    %143 = arith.mulf %141, %142 : vector<3x256xf32>
    %144 = vector.broadcast %139 : vector<1x256xf32> to vector<3x256xf32>
    %145 = arith.mulf %143, %144 : vector<3x256xf32>
    %c0_49 = arith.constant 0 : index
    %c0_50 = arith.constant 0 : index
    %c0_51 = arith.constant 0 : index
    %146 = vector.load %arg7[%c0_49, %c0_50, %c0_51] : memref<1x3x256xf32, #tpu.memory_space<vmem>>, vector<1x3x256xf32>
    %147 = vector.shape_cast %146 : vector<1x3x256xf32> to vector<3x256xf32>
    %148 = vector.shape_cast %145 : vector<3x256xf32> to vector<1x3x256xf32>
    tpu.vector_store %arg7[%c0_49, %c0_50, %c0_51], %148 {strides = array<i32>} : memref<1x3x256xf32, #tpu.memory_space<vmem>>, vector<1x3x256xf32>,
    return
  }
  func.func @transform_0(%arg0: i32, %arg1: i32) -> (i32, i32, i32) {
    %c0_i32 = arith.constant 0 : i32
    %c0_i32_0 = arith.constant 0 : i32
    return %arg0, %c0_i32, %arg1 : i32, i32, i32
  }
  func.func @transform_1(%arg0: i32, %arg1: i32) -> (i32, i32, i32) {
    %c0_i32 = arith.constant 0 : i32
    %c0_i32_0 = arith.constant 0 : i32
    return %arg0, %c0_i32, %arg1 : i32, i32, i32
  }
  func.func @transform_2(%arg0: i32, %arg1: i32) -> (i32, i32, i32) {
    %c0_i32 = arith.constant 0 : i32
    %c0_i32_0 = arith.constant 0 : i32
    return %arg0, %c0_i32, %arg1 : i32, i32, i32
  }
  func.func @transform_3(%arg0: i32, %arg1: i32) -> (i32, i32, i32) {
    %c0_i32 = arith.constant 0 : i32
    %c0_i32_0 = arith.constant 0 : i32
    %c0_i32_1 = arith.constant 0 : i32
    return %arg0, %c0_i32, %c0_i32_0 : i32, i32, i32
  }
  func.func @transform_4(%arg0: i32, %arg1: i32) -> (i32, i32, i32) {
    %c0_i32 = arith.constant 0 : i32
    %c0_i32_0 = arith.constant 0 : i32
    %c0_i32_1 = arith.constant 0 : i32
    return %arg0, %c0_i32, %c0_i32_0 : i32, i32, i32
  }
  func.func @transform_5(%arg0: i32, %arg1: i32) -> (i32, i32, i32) {
    %c0_i32 = arith.constant 0 : i32
    %c0_i32_0 = arith.constant 0 : i32
    return %arg0, %c0_i32, %arg1 : i32, i32, i32
  }
}

</mosaic_0001>

<llo_original>
// kernel: tpu_custom_call.1
$region0: #{tpu_custom_call.1}
  #allocation0 [shape = 'u32[]', space=smem, size = 0x4, offset = 0x4, fixed_abs, tag = 'smem constant byte address 0x4 - core index']
  #allocation1 [shape = 'u32[144,128]{1,0:T(1,128)}', space=vmem, size = 0x12000, scoped, tag = 'internal scratch']
  %s0 = inlined_call_operand.vmem [shape: f32[2,3,256], index: 0, kind: input, shape index: {}]
  %s1 = inlined_call_operand.vmem [shape: f32[2,3,256], index: 1, kind: input, shape index: {}]
  %s2 = inlined_call_operand.vmem [shape: f32[2,8,256], index: 2, kind: input, shape index: {}]
  %s3 = inlined_call_operand.vmem [shape: bf16[2,48,128], index: 3, kind: input, shape index: {}]
  %s4 = inlined_call_operand.vmem [shape: f32[2,3,3], index: 4, kind: input, shape index: {}]
  %s5 = inlined_call_operand.vmem [shape: f32[2,3,256], index: 5, kind: output, shape index: {}]
  %s6 = sld [smem:[#allocation0]]
  $region53: #{tpu_custom_call.1} parent=0
    _
  %s8 = ssub.s32 1, %s6
  %s9 = scalar_select 0, %s8, %s6
  loop: start=0, step=1, limit=4
  $region2: #{tpu_custom_call.1} parent=0 // loop_pre_header
    _
  $region3: #{tpu_custom_call.1} parent=0 // loop_header
    %s11 = sphi 0, %s15
    %p12 = scmp.ge.s32.totalorder %s11, 4
    %s18 = sphi 0, %s30
    %s19 = sphi 0, %s26
    %s20 = sphi 0, %s18
    %s21 = sphi 0, %s19
    %s22 = sphi 0, %s20
    %s23 = sphi 0, %s21
    %s35 = sphi 0, %s37
    %s38 = sphi 0, %s35
    %s39 = sphi 0, %s38
    %s55 = sphi 0, %s39
    %s63 = sphi 0, %s65
    %s66 = sphi 0, %s63
    %s67 = sphi 0, %s66
    %s83 = sphi 0, %s67
    %s91 = sphi 0, %s93
    %s94 = sphi 0, %s91
    %s95 = sphi 0, %s94
    %s111 = sphi 0, %s95
    %s117 = sphi 0, %s119
    %s120 = sphi 0, %s117
    %s121 = sphi 0, %s120
    %s137 = sphi 0, %s121
    %s143 = sphi 0, %s145
    %s146 = sphi 0, %s143
    %s147 = sphi 0, %s146
    %s163 = sphi 0, %s147
    %s171 = sphi 0, %s173
    %s174 = sphi 0, %s171
    %s175 = sphi 0, %s174
    %s191 = sphi 0, %s175
  $region4: #{tpu_custom_call.1} parent=0 // loop_header_branch
    %14 = sbr.rel (%p12) target = $region8
  $region5: #{tpu_custom_call.1} parent=0 // loop_body
    %s16 = ssub.s32 %s11, 1
    %s17 = ssub.s32 %s11, 2
    %s24 = sadd.s32 1, %s19
    %p25 = scmp.ge.s32.totalorder %s24, 1
    %s26 = scalar_select %p25, 0, %s24
    %s27 = sadd.s32 1, %s18
    %s28 = scalar_select %p25, %s27, %s18
    %p29 = scmp.ge.s32.totalorder %s28, 2
    %s30 = scalar_select %p29, 0, %s28
    %s31 = ssub.s32 %s18, %s30
    %s32 = ssub.s32 %s19, %s26
    %s33 = sor.u32 %s31, %s32
    %p34 = scmp.eq.s32.totalorder %s33, 0
    %s36 = sadd.s32 %s35, 1
    %s37 = scalar_select %p34, %s35, %s36
    %p40 = pneg %p34
    %p41 = scmp.eq.s32.totalorder %s11, 1
    %p42 = por %p40, %p41
    %p43 = scmp.ne.s32.totalorder %s35, %s38
    %p44 = scmp.eq.s32.totalorder %s11, 0
    %p45 = por %p43, %p44
    %p46 = scmp.ne.s32.totalorder %s35, %s38
    %p47 = scmp.eq.s32.totalorder %s16, 1
    %p48 = por %p46, %p47
    %p49 = scmp.ne.s32.totalorder %s38, %s39
    %p50 = scmp.eq.s32.totalorder %s16, 0
    %p51 = por %p49, %p50
    %p52 = scmp.ne.s32.totalorder %s38, %s39
    %p53 = scmp.eq.s32.totalorder %s17, 1
    %p54 = por %p52, %p53
    %p56 = scmp.ne.s32.totalorder %s39, %s55
    %p57 = scmp.eq.s32.totalorder %s17, 0
    %p58 = por %p56, %p57
    %s59 = ssub.s32 %s18, %s30
    %s60 = ssub.s32 %s19, %s26
    %s61 = sor.u32 %s59, %s60
    %p62 = scmp.eq.s32.totalorder %s61, 0
    %s64 = sadd.s32 %s63, 1
    %s65 = scalar_select %p62, %s63, %s64
    %p68 = pneg %p62
    %p69 = scmp.eq.s32.totalorder %s11, 1
    %p70 = por %p68, %p69
    %p71 = scmp.ne.s32.totalorder %s63, %s66
    %p72 = scmp.eq.s32.totalorder %s11, 0
    %p73 = por %p71, %p72
    %p74 = scmp.ne.s32.totalorder %s63, %s66
    %p75 = scmp.eq.s32.totalorder %s16, 1
    %p76 = por %p74, %p75
    %p77 = scmp.ne.s32.totalorder %s66, %s67
    %p78 = scmp.eq.s32.totalorder %s16, 0
    %p79 = por %p77, %p78
    %p80 = scmp.ne.s32.totalorder %s66, %s67
    %p81 = scmp.eq.s32.totalorder %s17, 1
    %p82 = por %p80, %p81
    %p84 = scmp.ne.s32.totalorder %s67, %s83
    %p85 = scmp.eq.s32.totalorder %s17, 0
    %p86 = por %p84, %p85
    %s87 = ssub.s32 %s18, %s30
    %s88 = ssub.s32 %s19, %s26
    %s89 = sor.u32 %s87, %s88
    %p90 = scmp.eq.s32.totalorder %s89, 0
    %s92 = sadd.s32 %s91, 1
    %s93 = scalar_select %p90, %s91, %s92
    %p96 = pneg %p90
    %p97 = scmp.eq.s32.totalorder %s11, 1
    %p98 = por %p96, %p97
    %p99 = scmp.ne.s32.totalorder %s91, %s94
    %p100 = scmp.eq.s32.totalorder %s11, 0
    %p101 = por %p99, %p100
    %p102 = scmp.ne.s32.totalorder %s91, %s94
    %p103 = scmp.eq.s32.totalorder %s16, 1
    %p104 = por %p102, %p103
    %p105 = scmp.ne.s32.totalorder %s94, %s95
    %p106 = scmp.eq.s32.totalorder %s16, 0
    %p107 = por %p105, %p106
    %p108 = scmp.ne.s32.totalorder %s94, %s95
    %p109 = scmp.eq.s32.totalorder %s17, 1
    %p110 = por %p108, %p109
    %p112 = scmp.ne.s32.totalorder %s95, %s111
    %p113 = scmp.eq.s32.totalorder %s17, 0
    %p114 = por %p112, %p113
    %s115 = ssub.s32 %s18, %s30
    %p116 = scmp.eq.s32.totalorder %s115, 0
    %s118 = sadd.s32 %s117, 1
    %s119 = scalar_select %p116, %s117, %s118
    %p122 = pneg %p116
    %p123 = scmp.eq.s32.totalorder %s11, 1
    %p124 = por %p122, %p123
    %p125 = scmp.ne.s32.totalorder %s117, %s120
    %p126 = scmp.eq.s32.totalorder %s11, 0
    %p127 = por %p125, %p126
    %p128 = scmp.ne.s32.totalorder %s117, %s120
    %p129 = scmp.eq.s32.totalorder %s16, 1
    %p130 = por %p128, %p129
    %p131 = scmp.ne.s32.totalorder %s120, %s121
    %p132 = scmp.eq.s32.totalorder %s16, 0
    %p133 = por %p131, %p132
    %p134 = scmp.ne.s32.totalorder %s120, %s121
    %p135 = scmp.eq.s32.totalorder %s17, 1
    %p136 = por %p134, %p135
    %p138 = scmp.ne.s32.totalorder %s121, %s137
    %p139 = scmp.eq.s32.totalorder %s17, 0
    %p140 = por %p138, %p139
    %s141 = ssub.s32 %s18, %s30
    %p142 = scmp.eq.s32.totalorder %s141, 0
    %s144 = sadd.s32 %s143, 1
    %s145 = scalar_select %p142, %s143, %s144
    %p148 = pneg %p142
    %p149 = scmp.eq.s32.totalorder %s11, 1
    %p150 = por %p148, %p149
    %p151 = scmp.ne.s32.totalorder %s143, %s146
    %p152 = scmp.eq.s32.totalorder %s11, 0
    %p153 = por %p151, %p152
    %p154 = scmp.ne.s32.totalorder %s143, %s146
    %p155 = scmp.eq.s32.totalorder %s16, 1
    %p156 = por %p154, %p155
    %p157 = scmp.ne.s32.totalorder %s146, %s147
    %p158 = scmp.eq.s32.totalorder %s16, 0
    %p159 = por %p157, %p158
    %p160 = scmp.ne.s32.totalorder %s146, %s147
    %p161 = scmp.eq.s32.totalorder %s17, 1
    %p162 = por %p160, %p161
    %p164 = scmp.ne.s32.totalorder %s147, %s163
    %p165 = scmp.eq.s32.totalorder %s17, 0
    %p166 = por %p164, %p165
    %s167 = ssub.s32 %s18, %s30
    %s168 = ssub.s32 %s19, %s26
    %s169 = sor.u32 %s167, %s168
    %p170 = scmp.eq.s32.totalorder %s169, 0
    %s172 = sadd.s32 %s171, 1
    %s173 = scalar_select %p170, %s171, %s172
    %p176 = pneg %p170
    %p177 = scmp.eq.s32.totalorder %s11, 1
    %p178 = por %p176, %p177
    %p179 = scmp.ne.s32.totalorder %s171, %s174
    %p180 = scmp.eq.s32.totalorder %s11, 0
    %p181 = por %p179, %p180
    %p182 = scmp.ne.s32.totalorder %s171, %s174
    %p183 = scmp.eq.s32.totalorder %s16, 1
    %p184 = por %p182, %p183
    %p185 = scmp.ne.s32.totalorder %s174, %s175
    %p186 = scmp.eq.s32.totalorder %s16, 0
    %p187 = por %p185, %p186
    %p188 = scmp.ne.s32.totalorder %s174, %s175
    %p189 = scmp.eq.s32.totalorder %s17, 1
    %p190 = por %p188, %p189
    %p192 = scmp.ne.s32.totalorder %s175, %s191
    %p193 = scmp.eq.s32.totalorder %s17, 0
    %p194 = por %p192, %p193
    %p195 = scmp.le.s32.totalorder 1, %s11
    %p196 = scmp.lt.s32.totalorder %s11, 3
    %p197 = pnand %p195, %p196
    %p198 = pneg %p197
    // Predicated region
    $region9: #{tpu_custom_call.1} parent=5 // pred_check
      _
    $region10: #{tpu_custom_call.1} parent=5 // pred_check_branch
      %200 = sbr.rel (%p197) target = $region12
    $region11: #{tpu_custom_call.1} parent=5 // pred_region
      %s201 = ssub.s32 %s11, 1
    $region12: #{tpu_custom_call.1} parent=5 // pred_fallthru
      _
    %p202 = scmp.lt.s32.totalorder %s11, 2
    // Predicated region
    $region13: #{tpu_custom_call.1} parent=5 // pred_check
      %p203 = pneg %p202
    $region14: #{tpu_custom_call.1} parent=5 // pred_check_branch
      %205 = sbr.rel (%p203) target = $region16
    $region15: #{tpu_custom_call.1} parent=5 // pred_region
      // Predicated region
      $region17: #{tpu_custom_call.1} parent=15 // pred_check
        %p206 = pneg %p45
      $region18: #{tpu_custom_call.1} parent=15 // pred_check_branch
        %208 = sbr.rel (%p206) target = $region20
      $region19: #{tpu_custom_call.1} parent=15 // pred_region
        %s209 = smul.u32 2, %s19
        %p210 = scmp.lt.s32.totalorder %s18, 1
        %s211 = scalar_select %p210, %s18, 1
        %p212 = scmp.lt.s32.totalorder %s209, 1
        %s213 = scalar_select %p212, %s209, 1
        %s214 = smul.addr %s211, 2
        %s215 = sadd.s32 %s213, %s214
        %s216 = smul.addr %s215, 4
        %s217 = scalar_lea.vmem %s0, %s216
        %s218 = smul.u32 2, %s19
      $region20: #{tpu_custom_call.1} parent=15 // pred_fallthru
        _
      // Predicated region
      $region21: #{tpu_custom_call.1} parent=15 // pred_check
        %p219 = pneg %p73
      $region22: #{tpu_custom_call.1} parent=15 // pred_check_branch
        %221 = sbr.rel (%p219) target = $region24
      $region23: #{tpu_custom_call.1} parent=15 // pred_region
        %s222 = smul.u32 2, %s19
        %p223 = scmp.lt.s32.totalorder %s18, 1
        %s224 = scalar_select %p223, %s18, 1
        %p225 = scmp.lt.s32.totalorder %s222, 1
        %s226 = scalar_select %p225, %s222, 1
        %s227 = smul.addr %s224, 2
        %s228 = sadd.s32 %s226, %s227
        %s229 = smul.addr %s228, 4
        %s230 = scalar_lea.vmem %s1, %s229
        %s231 = smul.u32 2, %s19
      $region24: #{tpu_custom_call.1} parent=15 // pred_fallthru
        _
      // Predicated region
      $region25: #{tpu_custom_call.1} parent=15 // pred_check
        %p232 = pneg %p101
      $region26: #{tpu_custom_call.1} parent=15 // pred_check_branch
        %234 = sbr.rel (%p232) target = $region28
      $region27: #{tpu_custom_call.1} parent=15 // pred_region
        %s235 = smul.u32 2, %s19
        %p236 = scmp.lt.s32.totalorder %s18, 1
        %s237 = scalar_select %p236, %s18, 1
        %p238 = scmp.lt.s32.totalorder %s235, 1
        %s239 = scalar_select %p238, %s235, 1
        %s240 = smul.addr %s237, 2
        %s241 = sadd.s32 %s239, %s240
        %s242 = smul.addr %s241, 8
        %s243 = scalar_lea.vmem %s2, %s242
        %s244 = smul.u32 2, %s19
      $region28: #{tpu_custom_call.1} parent=15 // pred_fallthru
        _
      // Predicated region
      $region29: #{tpu_custom_call.1} parent=15 // pred_check
        %p245 = pneg %p127
      $region30: #{tpu_custom_call.1} parent=15 // pred_check_branch
        %247 = sbr.rel (%p245) target = $region32
      $region31: #{tpu_custom_call.1} parent=15 // pred_region
        %p248 = scmp.lt.s32.totalorder %s18, 1
        %s249 = scalar_select %p248, %s18, 1
        %s250 = smul.addr %s249, 6
        %s251 = smul.addr %s250, 4
        %s252 = scalar_lea.vmem %s3, %s251
      $region32: #{tpu_custom_call.1} parent=15 // pred_fallthru
        _
      // Predicated region
      $region33: #{tpu_custom_call.1} parent=15 // pred_check
        %p253 = pneg %p153
      $region34: #{tpu_custom_call.1} parent=15 // pred_check_branch
        %255 = sbr.rel (%p253) target = $region36
      $region35: #{tpu_custom_call.1} parent=15 // pred_region
        %p256 = scmp.lt.s32.totalorder %s18, 1
        %s257 = scalar_select %p256, %s18, 1
        %s258 = smul.addr %s257, 4
        %s259 = scalar_lea.vmem %s4, %s258
      $region36: #{tpu_custom_call.1} parent=15 // pred_fallthru
        _
    $region16: #{tpu_custom_call.1} parent=5 // pred_fallthru
      _
    %p260 = scmp.le.s32.totalorder 1, %s11
    %p261 = scmp.lt.s32.totalorder %s11, 3
    %p262 = pnand %p260, %p261
    %p263 = pneg %p262
    // Predicated region
    $region37: #{tpu_custom_call.1} parent=5 // pred_check
      _
    $region38: #{tpu_custom_call.1} parent=5 // pred_check_branch
      %265 = sbr.rel (%p262) target = $region40
    $region39: #{tpu_custom_call.1} parent=5 // pred_region
      %s266 = ssub.s32 %s11, 1
      %s267 = smul.u32 2, %s21
      %p268 = scmp.lt.s32.totalorder %s20, 1
      %s269 = scalar_select %p268, %s20, 1
      %p270 = scmp.lt.s32.totalorder %s267, 1
      %s271 = scalar_select %p270, %s267, 1
      %s272 = smul.addr %s269, 2
      %s273 = sadd.s32 %s271, %s272
      %s274 = smul.addr %s273, 4
      %s275 = scalar_lea.vmem %s0, %s274
      %p276 = pneg %p51
      %p277 = pneg %p48
      %s278 = smul.u32 2, %s21
      %p279 = scmp.lt.s32.totalorder %s20, 1
      %s280 = scalar_select %p279, %s20, 1
      %p281 = scmp.lt.s32.totalorder %s278, 1
      %s282 = scalar_select %p281, %s278, 1
      %s283 = smul.addr %s280, 2
      %s284 = sadd.s32 %s282, %s283
      %s285 = smul.addr %s284, 4
      %s286 = scalar_lea.vmem %s1, %s285
      %p287 = pneg %p79
      %p288 = pneg %p76
      %s289 = smul.u32 2, %s21
      %p290 = scmp.lt.s32.totalorder %s20, 1
      %s291 = scalar_select %p290, %s20, 1
      %p292 = scmp.lt.s32.totalorder %s289, 1
      %s293 = scalar_select %p292, %s289, 1
      %s294 = smul.addr %s291, 2
      %s295 = sadd.s32 %s293, %s294
      %s296 = smul.addr %s295, 8
      %s297 = scalar_lea.vmem %s2, %s296
      %p298 = pneg %p107
      %p299 = pneg %p104
      %p300 = scmp.lt.s32.totalorder %s20, 1
      %s301 = scalar_select %p300, %s20, 1
      %s302 = smul.addr %s301, 6
      %s303 = smul.addr %s302, 4
      %s304 = scalar_lea.vmem %s3, %s303
      %p305 = pneg %p133
      %p306 = pneg %p130
      %p307 = scmp.lt.s32.totalorder %s20, 1
      %s308 = scalar_select %p307, %s20, 1
      %s309 = smul.addr %s308, 4
      %s310 = scalar_lea.vmem %s4, %s309
      %p311 = pneg %p159
      %p312 = pneg %p156
      %p313 = pneg %p187
      %p314 = pneg %p184
      %s315 = smul.u32 2, %s21
      %p316 = scmp.lt.s32.totalorder %s20, 1
      %s317 = scalar_select %p316, %s20, 1
      %p318 = scmp.lt.s32.totalorder %s315, 1
      %s319 = scalar_select %p318, %s315, 1
      %s320 = smul.addr %s317, 2
      %s321 = sadd.s32 %s319, %s320
      %s322 = smul.addr %s321, 4
      %s323 = scalar_lea.vmem %s5, %s322
      %s324 = smul.u32 2, %s21
      %p325 = scmp.lt.s32.totalorder %s20, 1
      %s326 = scalar_select %p325, %s20, 1
      %p327 = scmp.lt.s32.totalorder %s324, 1
      %s328 = scalar_select %p327, %s324, 1
      %s329 = smul.addr %s326, 2
      %s330 = sadd.s32 %s328, %s329
      %s331 = smul.addr %s330, 4
      %s332 = scalar_lea.vmem %s0, %s331
      %s333 = smul.u32 2, %s21
      %s334 = smul.u32 2, %s21
      %p335 = scmp.lt.s32.totalorder %s20, 1
      %s336 = scalar_select %p335, %s20, 1
      %p337 = scmp.lt.s32.totalorder %s334, 1
      %s338 = scalar_select %p337, %s334, 1
      %s339 = smul.addr %s336, 2
      %s340 = sadd.s32 %s338, %s339
      %s341 = smul.addr %s340, 4
      %s342 = scalar_lea.vmem %s1, %s341
      %s343 = smul.u32 2, %s21
      %s344 = smul.u32 2, %s21
      %p345 = scmp.lt.s32.totalorder %s20, 1
      %s346 = scalar_select %p345, %s20, 1
      %p347 = scmp.lt.s32.totalorder %s344, 1
      %s348 = scalar_select %p347, %s344, 1
      %s349 = smul.addr %s346, 2
      %s350 = sadd.s32 %s348, %s349
      %s351 = smul.addr %s350, 8
      %s352 = scalar_lea.vmem %s2, %s351
      %s353 = smul.u32 2, %s21
      %p354 = scmp.lt.s32.totalorder %s20, 1
      %s355 = scalar_select %p354, %s20, 1
      %s356 = smul.addr %s355, 6
      %s357 = smul.addr %s356, 4
      %s358 = scalar_lea.vmem %s3, %s357
      %p359 = scmp.lt.s32.totalorder %s20, 1
      %s360 = scalar_select %p359, %s20, 1
      %s361 = smul.addr %s360, 4
      %s362 = scalar_lea.vmem %s4, %s361
      %s363 = smul.u32 2, %s21
      %p364 = scmp.lt.s32.totalorder %s20, 1
      %s365 = scalar_select %p364, %s20, 1
      %p366 = scmp.lt.s32.totalorder %s363, 1
      %s367 = scalar_select %p366, %s363, 1
      %s368 = smul.addr %s365, 2
      %s369 = sadd.s32 %s367, %s368
      %s370 = smul.addr %s369, 4
      %s371 = scalar_lea.vmem %s5, %s370
      %s372 = smul.u32 2, %s21
      %v374 = vld [vmem:[%s332] sm:$0x77]
      %v375 = vld [vmem:[%s342] sm:$0x77]
      %v376 = vld [vmem:[%s352] sm:$0xff]
      %v377 = vld [vmem:[%s352 + $0x8] sm:$0xff]
      %v378 = vld [vmem:[%s358] sm:$0xf]
      %v379 = vld [vmem:[%s358 + $0x4] sm:$0xf]
      %v380 = vld [vmem:[%s358 + $0x8] sm:$0xf]
      %v381 = vld [vmem:[%s358 + $0xc] sm:$0xf]
      %v382 = vld [vmem:[%s358 + $0x10] sm:$0xf]
      %v383 = vld [vmem:[%s358 + $0x14] sm:$0xf]
      %v384 = vld [vmem:[%s362] sm:$0x7]
      %386 = vset.pattern.permute.xlu0 0
      %387 = vperm.xlu0 %386, %v384
      %v388 = vpop.permute.xlu0 %387
      %v391 = vcombine.high %v374, %v374
      %v393 = vsub.f32 %v388, %v374
      %v394 = vsub.f32 %v388, %v391
      %395 = vset.pattern.permute.xlu0 2
      %396 = vperm.xlu0 %395, %v384
      %v397 = vpop.permute.xlu0 %396
      %v399 = vsub.f32 %v397, %v374
      %v400 = vsub.f32 %v397, %v391
      %v401 = vmul.f32 %v375, %v375
      %v403 = vcombine.high %v401, %v401
      %vm405 = vcmask 1042432
      %v406 = vsel %vm405, %v401, 0.0
      %v407 = vrot.slane %v406, 4
      %v408 = vadd.f32 %v406, %v407
      %v409 = vrot.slane %v408, 2
      %v410 = vadd.f32 %v408, %v409
      %v411 = vrot.slane %v410, 1
      %v412 = vadd.f32 %v410, %v411
      %v413 = vsel %vm405, %v403, 0.0
      %v414 = vrot.slane %v413, 4
      %v415 = vadd.f32 %v413, %v414
      %v416 = vrot.slane %v415, 2
      %v417 = vadd.f32 %v415, %v416
      %v418 = vrot.slane %v417, 1
      %v419 = vadd.f32 %v417, %v418
      %v420 = vmax.f32 %v412, 1e-24
      %v421 = vmax.f32 %v419, 1e-24
      %v422 = vrsqrt.pop %v420
      %v423 = vrsqrt.pop %v421
      %v426 = vcombine.low %v422, %v423
      %v428 = vmul.f32 %v375, %v426
      %v429 = vmul.f32 %v393, %v393
      %v430 = vmul.f32 %v394, %v394
      %v431 = vsel %vm405, %v429, 0.0
      %v432 = vrot.slane %v431, 4
      %v433 = vadd.f32 %v431, %v432
      %v434 = vrot.slane %v433, 2
      %v435 = vadd.f32 %v433, %v434
      %v436 = vrot.slane %v435, 1
      %v437 = vadd.f32 %v435, %v436
      %v438 = vsel %vm405, %v430, 0.0
      %v439 = vrot.slane %v438, 4
      %v440 = vadd.f32 %v438, %v439
      %v441 = vrot.slane %v440, 2
      %v442 = vadd.f32 %v440, %v441
      %v443 = vrot.slane %v442, 1
      %v444 = vadd.f32 %v442, %v443
      %v445 = vmax.f32 %v437, 1e-24
      %v446 = vmax.f32 %v444, 1e-24
      %v447 = vrsqrt.pop %v445
      %v448 = vrsqrt.pop %v446
      %v449 = vmul.f32 %v393, %v447
      %v450 = vmul.f32 %v394, %v448
      %v451 = vmul.f32 %v399, %v399
      %v452 = vmul.f32 %v400, %v400
      %v453 = vsel %vm405, %v451, 0.0
      %v454 = vrot.slane %v453, 4
      %v455 = vadd.f32 %v453, %v454
      %v456 = vrot.slane %v455, 2
      %v457 = vadd.f32 %v455, %v456
      %v458 = vrot.slane %v457, 1
      %v459 = vadd.f32 %v457, %v458
      %v460 = vsel %vm405, %v452, 0.0
      %v461 = vrot.slane %v460, 4
      %v462 = vadd.f32 %v460, %v461
      %v463 = vrot.slane %v462, 2
      %v464 = vadd.f32 %v462, %v463
      %v465 = vrot.slane %v464, 1
      %v466 = vadd.f32 %v464, %v465
      %v467 = vmax.f32 %v459, 1e-24
      %v468 = vmax.f32 %v466, 1e-24
      %v469 = vrsqrt.pop %v467
      %v470 = vrsqrt.pop %v468
      %v471 = vmul.f32 %v399, %v469
      %v472 = vmul.f32 %v400, %v470
      %v473 = vadd.f32 %v449, %v471
      %v474 = vadd.f32 %v450, %v472
      %v475 = vmul.f32 %v473, %v473
      %v476 = vmul.f32 %v474, %v474
      %v477 = vsel %vm405, %v475, 0.0
      %v478 = vrot.slane %v477, 4
      %v479 = vadd.f32 %v477, %v478
      %v480 = vrot.slane %v479, 2
      %v481 = vadd.f32 %v479, %v480
      %v482 = vrot.slane %v481, 1
      %v483 = vadd.f32 %v481, %v482
      %v484 = vsel %vm405, %v476, 0.0
      %v485 = vrot.slane %v484, 4
      %v486 = vadd.f32 %v484, %v485
      %v487 = vrot.slane %v486, 2
      %v488 = vadd.f32 %v486, %v487
      %v489 = vrot.slane %v488, 1
      %v490 = vadd.f32 %v488, %v489
      %v491 = vmax.f32 %v483, 1e-24
      %v492 = vmax.f32 %v490, 1e-24
      %v493 = vrsqrt.pop %v491
      %v494 = vrsqrt.pop %v492
      %v495 = vmul.f32 %v473, %v493
      %v496 = vmul.f32 %v474, %v494
      %v498 = vcombine.high %v428, %v428
      %v500 = vmul.f32 %v495, %v428
      %v501 = vmul.f32 %v496, %v498
      %v502 = vsel %vm405, %v500, 0.0
      %v503 = vrot.slane %v502, 4
      %v504 = vadd.f32 %v502, %v503
      %v505 = vrot.slane %v504, 2
      %v506 = vadd.f32 %v504, %v505
      %v507 = vrot.slane %v506, 1
      %v508 = vadd.f32 %v506, %v507
      %v509 = vsel %vm405, %v501, 0.0
      %v510 = vrot.slane %v509, 4
      %v511 = vadd.f32 %v509, %v510
      %v512 = vrot.slane %v511, 2
      %v513 = vadd.f32 %v511, %v512
      %v514 = vrot.slane %v513, 1
      %v515 = vadd.f32 %v513, %v514
      %v516 = vmax.f32 %v508, -0.9999999
      %v517 = vmax.f32 %v515, -0.9999999
      %v518 = vmin.f32 %v516, 0.9999999
      %v519 = vmin.f32 %v517, 0.9999999
      %v520 = vmul.f32 %v518, %v518
      %v521 = vmul.f32 %v519, %v519
      %v522 = vsub.f32 1.0, %v520
      %v523 = vsub.f32 1.0, %v521
      %v524 = vmax.f32 %v522, 0.0
      %v525 = vmax.f32 %v523, 0.0
      %v526 = vrsqrt.pop %v524
      %v527 = vmul.f32 %v524, %v526
      %vm528 = vcmp.eq.f32.partialorder %v524, inf
      %v529 = vsel %vm528, %v524, %v527
      %vm530 = vcmp.eq.f32.partialorder %v524, 0.0
      %v531 = vand.u32 %v524, 2147483648
      %v532 = vsel %vm530, %v531, %v529
      %v533 = vrsqrt.pop %v525
      %v534 = vmul.f32 %v525, %v533
      %vm535 = vcmp.eq.f32.partialorder %v525, inf
      %v536 = vsel %vm535, %v525, %v534
      %vm537 = vcmp.eq.f32.partialorder %v525, 0.0
      %v538 = vand.u32 %v525, 2147483648
      %v539 = vsel %vm537, %v538, %v536
      %v540 = vand.u32 2147483647, %v518
      %v541 = vand.u32 2147483647, %v532
      %v542 = vmin.f32 %v540, %v541
      %v543 = vmax.f32 %v540, %v541
      %v544 = vrcp.pop %v543
      %v545 = vmul.f32 %v542, %v544
      %v546 = vmul.f32 %v545, %v545
      %v547 = vmul.f32 0.002785687, %v546
      %v548 = vadd.f32 %v547, -0.015866
      %v549 = vmul.f32 %v548, %v546
      %v550 = vadd.f32 %v549, 0.04247222
      %v551 = vmul.f32 %v550, %v546
      %v552 = vadd.f32 %v551, -0.074975304
      %v553 = vmul.f32 %v552, %v546
      %v554 = vadd.f32 %v553, 0.1064488
      %v555 = vmul.f32 %v554, %v546
      %v556 = vadd.f32 %v555, -0.14207031
      %v557 = vmul.f32 %v556, %v546
      %v558 = vadd.f32 %v557, 0.19993454
      %v559 = vmul.f32 %v558, %v546
      %v560 = vadd.f32 %v559, -0.33333147
      %v561 = vmul.f32 %v560, %v546
      %v562 = vmul.f32 %v561, %v545
      %v563 = vadd.f32 %v562, %v545
      %vm564 = vcmp.gt.f32.partialorder %v541, %v540
      %v565 = vsub.f32 1.5707964, %v563
      %v566 = vsel %vm564, %v565, %v563
      %vm567 = vcmp.lt.f32.partialorder %v518, 0.0
      %v568 = vsub.f32 3.1415927, %v566
      %v569 = vsel %vm567, %v568, %v566
      %vm570 = vcmp.lt.s32.totalorder %v518, 0
      %v571 = vsel %vm570, 3.1415927, 0.0
      %vm572 = vcmp.eq.f32.partialorder %v532, 0.0
      %v573 = vsel %vm572, %v571, %v569
      %vm574 = vcmp.ne.f32.partialorder %v518, %v518
      %vm575 = vcmp.ne.f32.partialorder %v532, %v532
      %vm576 = vmor %vm574, %vm575
      %v577 = vsel %vm576, nan, %v573
      %vm578 = vcmp.lt.f32.partialorder %v518, 0.0
      %v579 = vsel %vm578, 2.3561945, 0.7853982
      %vm580 = vcmp.eq.s32.totalorder %v540, inf
      %vm581 = vcmp.eq.s32.totalorder %v541, inf
      %vm582 = vmand %vm580, %vm581
      %v583 = vsel %vm582, %v579, %v577
      %v584 = vand.u32 2147483647, %v583
      %v585 = vand.u32 %v532, 2147483648
      %v586 = vor.u32 %v584, %v585
      %v587 = vand.u32 2147483647, %v519
      %v588 = vand.u32 2147483647, %v539
      %v589 = vmin.f32 %v587, %v588
      %v590 = vmax.f32 %v587, %v588
      %v591 = vrcp.pop %v590
      %v592 = vmul.f32 %v589, %v591
      %v593 = vmul.f32 %v592, %v592
      %v594 = vmul.f32 0.002785687, %v593
      %v595 = vadd.f32 %v594, -0.015866
      %v596 = vmul.f32 %v595, %v593
      %v597 = vadd.f32 %v596, 0.04247222
      %v598 = vmul.f32 %v597, %v593
      %v599 = vadd.f32 %v598, -0.074975304
      %v600 = vmul.f32 %v599, %v593
      %v601 = vadd.f32 %v600, 0.1064488
      %v602 = vmul.f32 %v601, %v593
      %v603 = vadd.f32 %v602, -0.14207031
      %v604 = vmul.f32 %v603, %v593
      %v605 = vadd.f32 %v604, 0.19993454
      %v606 = vmul.f32 %v605, %v593
      %v607 = vadd.f32 %v606, -0.33333147
      %v608 = vmul.f32 %v607, %v593
      %v609 = vmul.f32 %v608, %v592
      %v610 = vadd.f32 %v609, %v592
      %vm611 = vcmp.gt.f32.partialorder %v588, %v587
      %v612 = vsub.f32 1.5707964, %v610
      %v613 = vsel %vm611, %v612, %v610
      %vm614 = vcmp.lt.f32.partialorder %v519, 0.0
      %v615 = vsub.f32 3.1415927, %v613
      %v616 = vsel %vm614, %v615, %v613
      %vm617 = vcmp.lt.s32.totalorder %v519, 0
      %v618 = vsel %vm617, 3.1415927, 0.0
      %vm619 = vcmp.eq.f32.partialorder %v539, 0.0
      %v620 = vsel %vm619, %v618, %v616
      %vm621 = vcmp.ne.f32.partialorder %v519, %v519
      %vm622 = vcmp.ne.f32.partialorder %v539, %v539
      %vm623 = vmor %vm621, %vm622
      %v624 = vsel %vm623, nan, %v620
      %vm625 = vcmp.lt.f32.partialorder %v519, 0.0
      %v626 = vsel %vm625, 2.3561945, 0.7853982
      %vm627 = vcmp.eq.s32.totalorder %v587, inf
      %vm628 = vcmp.eq.s32.totalorder %v588, inf
      %vm629 = vmand %vm627, %vm628
      %v630 = vsel %vm629, %v626, %v624
      %v631 = vand.u32 2147483647, %v630
      %v632 = vand.u32 %v539, 2147483648
      %v633 = vor.u32 %v631, %v632
      %v634 = vmul.f32 %v449, %v471
      %v635 = vmul.f32 %v450, %v472
      %v636 = vsel %vm405, %v634, 0.0
      %v637 = vrot.slane %v636, 4
      %v638 = vadd.f32 %v636, %v637
      %v639 = vrot.slane %v638, 2
      %v640 = vadd.f32 %v638, %v639
      %v641 = vrot.slane %v640, 1
      %v642 = vadd.f32 %v640, %v641
      %v643 = vsel %vm405, %v635, 0.0
      %v644 = vrot.slane %v643, 4
      %v645 = vadd.f32 %v643, %v644
      %v646 = vrot.slane %v645, 2
      %v647 = vadd.f32 %v645, %v646
      %v648 = vrot.slane %v647, 1
      %v649 = vadd.f32 %v647, %v648
      %v650 = vmax.f32 %v642, -0.9999999
      %v651 = vmax.f32 %v649, -0.9999999
      %v652 = vmin.f32 %v650, 0.9999999
      %v653 = vmin.f32 %v651, 0.9999999
      %v654 = vmul.f32 %v652, %v652
      %v655 = vmul.f32 %v653, %v653
      %v656 = vsub.f32 1.0, %v654
      %v657 = vsub.f32 1.0, %v655
      %v658 = vmax.f32 %v656, 0.0
      %v659 = vmax.f32 %v657, 0.0
      %v660 = vrsqrt.pop %v658
      %v661 = vmul.f32 %v658, %v660
      %vm662 = vcmp.eq.f32.partialorder %v658, inf
      %v663 = vsel %vm662, %v658, %v661
      %vm664 = vcmp.eq.f32.partialorder %v658, 0.0
      %v665 = vand.u32 %v658, 2147483648
      %v666 = vsel %vm664, %v665, %v663
      %v667 = vrsqrt.pop %v659
      %v668 = vmul.f32 %v659, %v667
      %vm669 = vcmp.eq.f32.partialorder %v659, inf
      %v670 = vsel %vm669, %v659, %v668
      %vm671 = vcmp.eq.f32.partialorder %v659, 0.0
      %v672 = vand.u32 %v659, 2147483648
      %v673 = vsel %vm671, %v672, %v670
      %v674 = vand.u32 2147483647, %v652
      %v675 = vand.u32 2147483647, %v666
      %v676 = vmin.f32 %v674, %v675
      %v677 = vmax.f32 %v674, %v675
      %v678 = vrcp.pop %v677
      %v679 = vmul.f32 %v676, %v678
      %v680 = vmul.f32 %v679, %v679
      %v681 = vmul.f32 0.002785687, %v680
      %v682 = vadd.f32 %v681, -0.015866
      %v683 = vmul.f32 %v682, %v680
      %v684 = vadd.f32 %v683, 0.04247222
      %v685 = vmul.f32 %v684, %v680
      %v686 = vadd.f32 %v685, -0.074975304
      %v687 = vmul.f32 %v686, %v680
      %v688 = vadd.f32 %v687, 0.1064488
      %v689 = vmul.f32 %v688, %v680
      %v690 = vadd.f32 %v689, -0.14207031
      %v691 = vmul.f32 %v690, %v680
      %v692 = vadd.f32 %v691, 0.19993454
      %v693 = vmul.f32 %v692, %v680
      %v694 = vadd.f32 %v693, -0.33333147
      %v695 = vmul.f32 %v694, %v680
      %v696 = vmul.f32 %v695, %v679
      %v697 = vadd.f32 %v696, %v679
      %vm698 = vcmp.gt.f32.partialorder %v675, %v674
      %v699 = vsub.f32 1.5707964, %v697
      %v700 = vsel %vm698, %v699, %v697
      %vm701 = vcmp.lt.f32.partialorder %v652, 0.0
      %v702 = vsub.f32 3.1415927, %v700
      %v703 = vsel %vm701, %v702, %v700
      %vm704 = vcmp.lt.s32.totalorder %v652, 0
      %v705 = vsel %vm704, 3.1415927, 0.0
      %vm706 = vcmp.eq.f32.partialorder %v666, 0.0
      %v707 = vsel %vm706, %v705, %v703
      %vm708 = vcmp.ne.f32.partialorder %v652, %v652
      %vm709 = vcmp.ne.f32.partialorder %v666, %v666
      %vm710 = vmor %vm708, %vm709
      %v711 = vsel %vm710, nan, %v707
      %vm712 = vcmp.lt.f32.partialorder %v652, 0.0
      %v713 = vsel %vm712, 2.3561945, 0.7853982
      %vm714 = vcmp.eq.s32.totalorder %v674, inf
      %vm715 = vcmp.eq.s32.totalorder %v675, inf
      %vm716 = vmand %vm714, %vm715
      %v717 = vsel %vm716, %v713, %v711
      %v718 = vand.u32 2147483647, %v717
      %v719 = vand.u32 %v666, 2147483648
      %v720 = vor.u32 %v718, %v719
      %v721 = vand.u32 2147483647, %v653
      %v722 = vand.u32 2147483647, %v673
      %v723 = vmin.f32 %v721, %v722
      %v724 = vmax.f32 %v721, %v722
      %v725 = vrcp.pop %v724
      %v726 = vmul.f32 %v723, %v725
      %v727 = vmul.f32 %v726, %v726
      %v728 = vmul.f32 0.002785687, %v727
      %v729 = vadd.f32 %v728, -0.015866
      %v730 = vmul.f32 %v729, %v727
      %v731 = vadd.f32 %v730, 0.04247222
      %v732 = vmul.f32 %v731, %v727
      %v733 = vadd.f32 %v732, -0.074975304
      %v734 = vmul.f32 %v733, %v727
      %v735 = vadd.f32 %v734, 0.1064488
      %v736 = vmul.f32 %v735, %v727
      %v737 = vadd.f32 %v736, -0.14207031
      %v738 = vmul.f32 %v737, %v727
      %v739 = vadd.f32 %v738, 0.19993454
      %v740 = vmul.f32 %v739, %v727
      %v741 = vadd.f32 %v740, -0.33333147
      %v742 = vmul.f32 %v741, %v727
      %v743 = vmul.f32 %v742, %v726
      %v744 = vadd.f32 %v743, %v726
      %vm745 = vcmp.gt.f32.partialorder %v722, %v721
      %v746 = vsub.f32 1.5707964, %v744
      %v747 = vsel %vm745, %v746, %v744
      %vm748 = vcmp.lt.f32.partialorder %v653, 0.0
      %v749 = vsub.f32 3.1415927, %v747
      %v750 = vsel %vm748, %v749, %v747
      %vm751 = vcmp.lt.s32.totalorder %v653, 0
      %v752 = vsel %vm751, 3.1415927, 0.0
      %vm753 = vcmp.eq.f32.partialorder %v673, 0.0
      %v754 = vsel %vm753, %v752, %v750
      %vm755 = vcmp.ne.f32.partialorder %v653, %v653
      %vm756 = vcmp.ne.f32.partialorder %v673, %v673
      %vm757 = vmor %vm755, %vm756
      %v758 = vsel %vm757, nan, %v754
      %vm759 = vcmp.lt.f32.partialorder %v653, 0.0
      %v760 = vsel %vm759, 2.3561945, 0.7853982
      %vm761 = vcmp.eq.s32.totalorder %v721, inf
      %vm762 = vcmp.eq.s32.totalorder %v722, inf
      %vm763 = vmand %vm761, %vm762
      %v764 = vsel %vm763, %v760, %v758
      %v765 = vand.u32 2147483647, %v764
      %v766 = vand.u32 %v673, 2147483648
      %v767 = vor.u32 %v765, %v766
      %v768 = vmul.f32 %v720, 0.5
      %v769 = vmul.f32 %v767, 0.5
      %v772 = vcombine.low %v449, %v450
      %v774 = vmul.f32 %v428, %v772
      %v776 = vcombine.high %v774, %v774
      %v778 = vsel %vm405, %v774, 0.0
      %v779 = vrot.slane %v778, 4
      %v780 = vadd.f32 %v778, %v779
      %v781 = vrot.slane %v780, 2
      %v782 = vadd.f32 %v780, %v781
      %v783 = vrot.slane %v782, 1
      %v784 = vadd.f32 %v782, %v783
      %v785 = vsel %vm405, %v776, 0.0
      %v786 = vrot.slane %v785, 4
      %v787 = vadd.f32 %v785, %v786
      %v788 = vrot.slane %v787, 2
      %v789 = vadd.f32 %v787, %v788
      %v790 = vrot.slane %v789, 1
      %v791 = vadd.f32 %v789, %v790
      %vm792 = vcmp.gt.f32.partialorder %v784, 0.0
      %vm793 = vcmp.gt.f32.partialorder %v791, 0.0
      %v796 = vcombine.low %v399, %v400
      %v798 = vmul.f32 %v375, %v796
      %v800 = vcombine.high %v798, %v798
      %v802 = vsel %vm405, %v798, 0.0
      %v803 = vrot.slane %v802, 4
      %v804 = vadd.f32 %v802, %v803
      %v805 = vrot.slane %v804, 2
      %v806 = vadd.f32 %v804, %v805
      %v807 = vrot.slane %v806, 1
      %v808 = vadd.f32 %v806, %v807
      %v809 = vsel %vm405, %v800, 0.0
      %v810 = vrot.slane %v809, 4
      %v811 = vadd.f32 %v809, %v810
      %v812 = vrot.slane %v811, 2
      %v813 = vadd.f32 %v811, %v812
      %v814 = vrot.slane %v813, 1
      %v815 = vadd.f32 %v813, %v814
      %vm816 = vcmp.gt.f32.partialorder %v808, 0.0
      %vm817 = vcmp.gt.f32.partialorder %v815, 0.0
      %vm818 = vmand %vm792, %vm816
      %vm819 = vmand %vm793, %vm817
      %v820 = vsel %vm818, %v784, 0.0
      %v821 = vsel %vm819, %v791, 0.0
      %v822 = vlaneseq
      %v823 = vshrl.u32 %v822, 7
      %v824 = vadd.s32 %v823, 8
      %v825 = vcvt.s32.f32 %v823
      %v826 = vcvt.s32.f32 %v824
      %v827 = vmul.f32 %v586, 9.656592
      %v828 = vmul.f32 %v633, 9.656592
      %v829 = vsub.f32 %v825, %v827
      %v830 = vsub.f32 %v825, %v828
      %v831 = vsub.f32 %v826, %v827
      %v832 = vsub.f32 %v826, %v828
      %v833 = vand.u32 2147483647, %v829
      %v834 = vand.u32 2147483647, %v830
      %v835 = vand.u32 2147483647, %v831
      %v836 = vand.u32 2147483647, %v832
      %v837 = vsub.f32 1.0, %v833
      %v838 = vsub.f32 1.0, %v834
      %v839 = vsub.f32 1.0, %v835
      %v840 = vsub.f32 1.0, %v836
      %v841 = vmax.f32 %v837, 0.0
      %v842 = vmax.f32 %v838, 0.0
      %v843 = vmax.f32 %v839, 0.0
      %v844 = vmax.f32 %v840, 0.0
      %v845 = vmul.f32 %v768, 9.656592
      %v846 = vmul.f32 %v769, 9.656592
      %v847 = vsub.f32 %v825, %v845
      %v848 = vsub.f32 %v825, %v846
      %v849 = vsub.f32 %v826, %v845
      %v850 = vsub.f32 %v826, %v846
      %v851 = vand.u32 2147483647, %v847
      %v852 = vand.u32 2147483647, %v848
      %v853 = vand.u32 2147483647, %v849
      %v854 = vand.u32 2147483647, %v850
      %v855 = vsub.f32 1.0, %v851
      %v856 = vsub.f32 1.0, %v852
      %v857 = vsub.f32 1.0, %v853
      %v858 = vsub.f32 1.0, %v854
      %v859 = vmax.f32 %v855, 0.0
      %v860 = vmax.f32 %v856, 0.0
      %v861 = vmax.f32 %v857, 0.0
      %v862 = vmax.f32 %v858, 0.0
      %v865 = vcombine.low %v376, %v377
      %v866 = vcombine.high %v376, %v377
      %v868 = vunpack.c.l.s4 1966171168
      %v869 = vunpack.c.0.s8 %v868
      %v870 = vlaneseq
      %v871 = vshrl.u32 %v870, 7
      %v872 = vsub.s32 %v869, %v871
      %v873 = vrot.slane %v865, %v872
      %v875 = vunpack.c.l.s4 1966171168
      %v876 = vunpack.c.0.s8 %v875
      %v877 = vlaneseq
      %v878 = vshrl.u32 %v877, 7
      %v879 = vsub.s32 %v876, %v878
      %v880 = vrot.slane %v866, %v879
      %v881 = vcombine.high %v873, %v873
      %v882 = vcombine.high %v880, %v880
      %v884 = vunpack.c.l.s4 1966171168
      %v885 = vunpack.c.0.s8 %v884
      %v886 = vlaneseq
      %v887 = vshrl.u32 %v886, 7
      %v888 = vsub.s32 %v885, %v887
      %v889 = vrot.slane %v873, %v888
      %v891 = vunpack.c.l.s4 1966171168
      %v892 = vunpack.c.0.s8 %v891
      %v893 = vlaneseq
      %v894 = vshrl.u32 %v893, 7
      %v895 = vsub.s32 %v892, %v894
      %v896 = vrot.slane %v880, %v895
      %v898 = vunpack.c.l.s4 1966171168
      %v899 = vunpack.c.0.s8 %v898
      %v900 = vlaneseq
      %v901 = vshrl.u32 %v900, 7
      %v902 = vsub.s32 %v899, %v901
      %v903 = vrot.slane %v881, %v902
      %v905 = vunpack.c.l.s4 1966171168
      %v906 = vunpack.c.0.s8 %v905
      %v907 = vlaneseq
      %v908 = vshrl.u32 %v907, 7
      %v909 = vsub.s32 %v906, %v908
      %v910 = vrot.slane %v882, %v909
      %v911 = vcombine.high %v889, %v889
      %v912 = vcombine.high %v896, %v896
      %v913 = vcombine.high %v903, %v903
      %v914 = vcombine.high %v910, %v910
      %v915 = vlaneseq
      %v916 = vshrl.u32 %v915, 7
      %v917 = vsub.s32 0, %v916
      %v918 = vrot.slane %v889, %v917
      %v919 = vlaneseq
      %v920 = vshrl.u32 %v919, 7
      %v921 = vsub.s32 1, %v920
      %v922 = vrot.slane %v889, %v921
      %v923 = vlaneseq
      %v924 = vshrl.u32 %v923, 7
      %v925 = vsub.s32 0, %v924
      %v926 = vrot.slane %v903, %v925
      %v927 = vlaneseq
      %v928 = vshrl.u32 %v927, 7
      %v929 = vsub.s32 1, %v928
      %v930 = vrot.slane %v903, %v929
      %v931 = vlaneseq
      %v932 = vshrl.u32 %v931, 7
      %v933 = vsub.s32 0, %v932
      %v934 = vrot.slane %v911, %v933
      %v935 = vlaneseq
      %v936 = vshrl.u32 %v935, 7
      %v937 = vsub.s32 1, %v936
      %v938 = vrot.slane %v911, %v937
      %v939 = vlaneseq
      %v940 = vshrl.u32 %v939, 7
      %v941 = vsub.s32 0, %v940
      %v942 = vrot.slane %v913, %v941
      %v943 = vlaneseq
      %v944 = vshrl.u32 %v943, 7
      %v945 = vsub.s32 1, %v944
      %v946 = vrot.slane %v913, %v945
      %v947 = vlaneseq
      %v948 = vshrl.u32 %v947, 7
      %v949 = vsub.s32 0, %v948
      %v950 = vrot.slane %v896, %v949
      %v951 = vlaneseq
      %v952 = vshrl.u32 %v951, 7
      %v953 = vsub.s32 1, %v952
      %v954 = vrot.slane %v896, %v953
      %v955 = vlaneseq
      %v956 = vshrl.u32 %v955, 7
      %v957 = vsub.s32 0, %v956
      %v958 = vrot.slane %v910, %v957
      %v959 = vlaneseq
      %v960 = vshrl.u32 %v959, 7
      %v961 = vsub.s32 1, %v960
      %v962 = vrot.slane %v910, %v961
      %v963 = vlaneseq
      %v964 = vshrl.u32 %v963, 7
      %v965 = vsub.s32 0, %v964
      %v966 = vrot.slane %v912, %v965
      %v967 = vlaneseq
      %v968 = vshrl.u32 %v967, 7
      %v969 = vsub.s32 1, %v968
      %v970 = vrot.slane %v912, %v969
      %v971 = vlaneseq
      %v972 = vshrl.u32 %v971, 7
      %v973 = vsub.s32 0, %v972
      %v974 = vrot.slane %v914, %v973
      %v975 = vlaneseq
      %v976 = vshrl.u32 %v975, 7
      %v977 = vsub.s32 1, %v976
      %v978 = vrot.slane %v914, %v977
      %v995 = vmul.f32 %v918, %v859
      %v996 = vmul.f32 %v922, %v860
      %v997 = vmul.f32 %v918, %v861
      %v998 = vmul.f32 %v922, %v862
      %v999 = vmul.f32 %v926, %v859
      %v1000 = vmul.f32 %v930, %v860
      %v1001 = vmul.f32 %v926, %v861
      %v1002 = vmul.f32 %v930, %v862
      %v1003 = vmul.f32 %v934, %v859
      %v1004 = vmul.f32 %v938, %v860
      %v1005 = vmul.f32 %v934, %v861
      %v1006 = vmul.f32 %v938, %v862
      %v1007 = vmul.f32 %v942, %v859
      %v1008 = vmul.f32 %v946, %v860
      %v1009 = vmul.f32 %v942, %v861
      %v1010 = vmul.f32 %v946, %v862
      %v1011 = vmul.f32 %v950, %v859
      %v1012 = vmul.f32 %v954, %v860
      %v1013 = vmul.f32 %v950, %v861
      %v1014 = vmul.f32 %v954, %v862
      %v1015 = vmul.f32 %v958, %v859
      %v1016 = vmul.f32 %v962, %v860
      %v1017 = vmul.f32 %v958, %v861
      %v1018 = vmul.f32 %v962, %v862
      %v1019 = vmul.f32 %v966, %v859
      %v1020 = vmul.f32 %v970, %v860
      %v1021 = vmul.f32 %v966, %v861
      %v1022 = vmul.f32 %v970, %v862
      %v1023 = vmul.f32 %v974, %v859
      %v1024 = vmul.f32 %v978, %v860
      %v1025 = vmul.f32 %v974, %v861
      %v1026 = vmul.f32 %v978, %v862
      %v1027 = vpack.c.bf16 %v997, %v995
      %v1028 = vpack.c.bf16 %v998, %v996
      %v1029 = vpack.c.bf16 %v1001, %v999
      %v1030 = vpack.c.bf16 %v1002, %v1000
      %v1031 = vpack.c.bf16 %v1005, %v1003
      %v1032 = vpack.c.bf16 %v1006, %v1004
      %v1033 = vpack.c.bf16 %v1009, %v1007
      %v1034 = vpack.c.bf16 %v1010, %v1008
      %v1035 = vpack.c.bf16 %v1013, %v1011
      %v1036 = vpack.c.bf16 %v1014, %v1012
      %v1037 = vpack.c.bf16 %v1017, %v1015
      %v1038 = vpack.c.bf16 %v1018, %v1016
      %v1039 = vpack.c.bf16 %v1021, %v1019
      %v1040 = vpack.c.bf16 %v1022, %v1020
      %v1041 = vpack.c.bf16 %v1025, %v1023
      %v1042 = vpack.c.bf16 %v1026, %v1024
      %v1049 = vunpack.c.l.b16 %v378
      %v1050 = vunpack.c.l.b16 %v379
      %v1051 = vunpack.c.l.b16 %v380
      %v1052 = vunpack.c.l.b16 %v381
      %v1053 = vunpack.c.l.b16 %v382
      %v1054 = vunpack.c.l.b16 %v383
      %v1055 = vpack.c.b16 %v1050, %v1049
      %v1056 = vpack.c.b16 %v1052, %v1051
      %v1057 = vpack.c.b16 %v1054, %v1053
      %1061 = vmatprep.subr.bf16.mxu0 %v1028
      %1062 = vmatpush1.bf16.msra.mxu0 %v1027
      %1063 = vmatprep.subr.bf16.mxu0 %v1030
      %1064 = vmatpush1.bf16.msra.mxu0 %v1029
      %1065 = vmatprep.subr.bf16.mxu0 %v1032
      %1066 = vmatpush1.bf16.msra.mxu0 %v1031
      %1067 = vmatprep.subr.bf16.mxu0 %v1034
      %1068 = vmatpush1.bf16.msra.mxu0 %v1033
      %1069 = vmatprep.subr.bf16.mxu0 %v1036
      %1070 = vmatpush1.bf16.msra.mxu0 %v1035
      %1071 = vmatprep.subr.bf16.mxu0 %v1038
      %1072 = vmatpush1.bf16.msra.mxu0 %v1037
      %1073 = vmatprep.subr.bf16.mxu0 %v1040
      %1074 = vmatpush1.bf16.msra.mxu0 %v1039
      %1075 = vmatprep.subr.bf16.mxu0 %v1042
      %1076 = vmatpush1.bf16.msra.mxu0 %v1041
      %1077 = vmatprep.subr.bf16.mxu0 0
      %1078 = vmatpush1.bf16.msra.mxu0 0
      %1079 = vmatprep.subr.bf16.mxu0 0
      %1080 = vmatpush1.bf16.msra.mxu0 0
      %1081 = vmatprep.subr.bf16.mxu0 0
      %1082 = vmatpush1.bf16.msra.mxu0 0
      %1083 = vmatprep.subr.bf16.mxu0 0
      %1084 = vmatpush1.bf16.msra.mxu0 0
      %1085 = vmatprep.subr.bf16.mxu0 0
      %1086 = vmatpush1.bf16.msra.mxu0 0
      %1087 = vmatprep.subr.bf16.mxu0 0
      %1088 = vmatpush1.bf16.msra.mxu0 0
      %1089 = vmatprep.subr.bf16.mxu0 0
      %1090 = vmatpush1.bf16.msra.mxu0 0
      %1091 = vmatprep.subr.bf16.mxu0 0
      %1092 = vmatpush1.bf16.msra.mxu0 0
      %1093 = vmatprep.mubr.bf16.mxu0 0
      %1094 = vmatmul.mubr.bf16.gmra.mrb[0].mxu0 %v1055
      %v1095 = vpop.f32.mrb[0].mxu0
      %v1096 = vadd.f32 0.0, %v1095
      %v1097 = vpop.f32.mrb[0].mxu0
      %v1098 = vadd.f32 0.0, %v1097
      %v1099 = vpop.f32.mrb[0].mxu0
      %v1100 = vadd.f32 0.0, %v1099
      %v1101 = vpop.f32.mrb[0].mxu0
      %v1102 = vadd.f32 0.0, %v1101
      %1103 = vmatprep.mubr.bf16.mxu0 0
      %1104 = vmatmul.mubr.bf16.gmra.mrb[0].mxu0 %v1056
      %v1105 = vpop.f32.mrb[0].mxu0
      %v1106 = vadd.f32 0.0, %v1105
      %v1107 = vpop.f32.mrb[0].mxu0
      %v1108 = vadd.f32 0.0, %v1107
      %v1109 = vpop.f32.mrb[0].mxu0
      %v1110 = vadd.f32 0.0, %v1109
      %v1111 = vpop.f32.mrb[0].mxu0
      %v1112 = vadd.f32 0.0, %v1111
      %1113 = vmatprep.mubr.bf16.mxu0 0
      %1114 = vmatmul.mubr.bf16.gmra.mrb[0].mxu0 %v1057
      %v1115 = vpop.f32.mrb[0].mxu0
      %v1116 = vadd.f32 0.0, %v1115
      %v1117 = vpop.f32.mrb[0].mxu0
      %v1118 = vadd.f32 0.0, %v1117
      %v1119 = vpop.f32.mrb[0].mxu0
      %v1120 = vadd.f32 0.0, %v1119
      %v1121 = vpop.f32.mrb[0].mxu0
      %v1122 = vadd.f32 0.0, %v1121
      %1123 = vdwg.mxu0
      %v1124 = vmul.f32 %v1096, %v841
      %v1125 = vmul.f32 %v1098, %v842
      %v1126 = vmul.f32 %v1100, %v843
      %v1127 = vmul.f32 %v1102, %v844
      %v1128 = vadd.f32 %v1124, %v1126
      %v1129 = vrot.slane %v1128, 4
      %v1130 = vadd.f32 %v1128, %v1129
      %v1131 = vrot.slane %v1130, 2
      %v1132 = vadd.f32 %v1130, %v1131
      %v1133 = vrot.slane %v1132, 1
      %v1134 = vadd.f32 %v1132, %v1133
      %v1135 = vadd.f32 %v1125, %v1127
      %v1136 = vrot.slane %v1135, 4
      %v1137 = vadd.f32 %v1135, %v1136
      %v1138 = vrot.slane %v1137, 2
      %v1139 = vadd.f32 %v1137, %v1138
      %v1140 = vrot.slane %v1139, 1
      %v1141 = vadd.f32 %v1139, %v1140
      %v1142 = vmul.f32 %v1106, %v841
      %v1143 = vmul.f32 %v1108, %v842
      %v1144 = vmul.f32 %v1110, %v843
      %v1145 = vmul.f32 %v1112, %v844
      %v1146 = vadd.f32 %v1142, %v1144
      %v1147 = vrot.slane %v1146, 4
      %v1148 = vadd.f32 %v1146, %v1147
      %v1149 = vrot.slane %v1148, 2
      %v1150 = vadd.f32 %v1148, %v1149
      %v1151 = vrot.slane %v1150, 1
      %v1152 = vadd.f32 %v1150, %v1151
      %v1153 = vadd.f32 %v1143, %v1145
      %v1154 = vrot.slane %v1153, 4
      %v1155 = vadd.f32 %v1153, %v1154
      %v1156 = vrot.slane %v1155, 2
      %v1157 = vadd.f32 %v1155, %v1156
      %v1158 = vrot.slane %v1157, 1
      %v1159 = vadd.f32 %v1157, %v1158
      %v1160 = vmul.f32 %v1116, %v841
      %v1161 = vmul.f32 %v1118, %v842
      %v1162 = vmul.f32 %v1120, %v843
      %v1163 = vmul.f32 %v1122, %v844
      %v1164 = vadd.f32 %v1160, %v1162
      %v1165 = vrot.slane %v1164, 4
      %v1166 = vadd.f32 %v1164, %v1165
      %v1167 = vrot.slane %v1166, 2
      %v1168 = vadd.f32 %v1166, %v1167
      %v1169 = vrot.slane %v1168, 1
      %v1170 = vadd.f32 %v1168, %v1169
      %v1171 = vadd.f32 %v1161, %v1163
      %v1172 = vrot.slane %v1171, 4
      %v1173 = vadd.f32 %v1171, %v1172
      %v1174 = vrot.slane %v1173, 2
      %v1175 = vadd.f32 %v1173, %v1174
      %v1176 = vrot.slane %v1175, 1
      %v1177 = vadd.f32 %v1175, %v1176
      %vm1178 = vcmask 1040384
      %v1179 = vsel %vm1178, %v1134, %v1152
      %v1180 = vsel %vm1178, %v1141, %v1159
      %vm1181 = vcmask 1041408
      %v1182 = vsel %vm1181, %v1179, %v1170
      %v1183 = vsel %vm1181, %v1180, %v1177
      %v1184 = vmax.f32 %v437, 1e-12
      %v1185 = vmax.f32 %v444, 1e-12
      %v1186 = vrcp.pop %v1184
      %v1187 = vrcp.pop %v1185
      %v1188 = vmul.f32 %v1182, %v820
      %v1189 = vmul.f32 %v1183, %v821
      %1190 = vset.pattern.permute.xlu0 1
      %1191 = vperm.xlu0 %1190, %v384
      %v1192 = vpop.permute.xlu0 %1191
      %v1194 = vmul.f32 %v1188, %v1192
      %v1195 = vmul.f32 %v1189, %v1192
      %v1196 = vmul.f32 %v1194, %v1186
      %v1197 = vmul.f32 %v1195, %v1187
      %v1200 = vcombine.low %v1196, %v1197
      %1202 = vst [vmem:[%s371] sm:$0x77] %v1200
      %s1203 = smul.u32 2, %s21
      %p1204 = scmp.lt.s32.totalorder %s20, 1
      %s1205 = scalar_select %p1204, %s20, 1
      %p1206 = scmp.lt.s32.totalorder %s1203, 1
      %s1207 = scalar_select %p1206, %s1203, 1
      %s1208 = smul.addr %s1205, 2
      %s1209 = sadd.s32 %s1207, %s1208
      %s1210 = smul.addr %s1209, 4
      %s1211 = scalar_lea.vmem %s5, %s1210
      // Predicated region
      $region41: #{tpu_custom_call.1} parent=39 // pred_check
        %p1212 = pneg %p184
      $region42: #{tpu_custom_call.1} parent=39 // pred_check_branch
        %1214 = sbr.rel (%p1212) target = $region44
      $region43: #{tpu_custom_call.1} parent=39 // pred_region
        %s1215 = smul.u32 2, %s21
      $region44: #{tpu_custom_call.1} parent=39 // pred_fallthru
        _
    $region40: #{tpu_custom_call.1} parent=5 // pred_fallthru
      _
    %p1216 = scmp.le.s32.totalorder 2, %s11
    // Predicated region
    $region45: #{tpu_custom_call.1} parent=5 // pred_check
      %p1217 = pneg %p1216
    $region46: #{tpu_custom_call.1} parent=5 // pred_check_branch
      %1219 = sbr.rel (%p1217) target = $region48
    $region47: #{tpu_custom_call.1} parent=5 // pred_region
      %s1220 = ssub.s32 %s11, 2
      // Predicated region
      $region49: #{tpu_custom_call.1} parent=47 // pred_check
        %p1221 = pneg %p190
      $region50: #{tpu_custom_call.1} parent=47 // pred_check_branch
        %1223 = sbr.rel (%p1221) target = $region52
      $region51: #{tpu_custom_call.1} parent=47 // pred_region
        %s1224 = smul.u32 2, %s23
        %p1225 = scmp.lt.s32.totalorder %s22, 1
        %s1226 = scalar_select %p1225, %s22, 1
        %p1227 = scmp.lt.s32.totalorder %s1224, 1
        %s1228 = scalar_select %p1227, %s1224, 1
        %s1229 = smul.addr %s1226, 2
        %s1230 = sadd.s32 %s1228, %s1229
        %s1231 = smul.addr %s1230, 4
        %s1232 = scalar_lea.vmem %s5, %s1231
      $region52: #{tpu_custom_call.1} parent=47 // pred_fallthru
        _
    $region48: #{tpu_custom_call.1} parent=5 // pred_fallthru
      _
  $region6: #{tpu_custom_call.1} parent=0 // loop_footer
    %s15 = sadd.s32 1, %s11
  $region7: #{tpu_custom_call.1} parent=0 // loop_footer_branch
    %10 = sbr.rel target = $region3
  $region8: #{tpu_custom_call.1} parent=0 // loop_exit
    _

</llo_original>
